<compile_context>
chip_gen: v7x
topology: tpu7x:2x2x1
jax: 0.10.0
libtpu: 0.0.40
codegen_flags: <defaults>
</compile_context>

<pallas_src>
import functools

import numpy as np
import jax
import jax.numpy as jnp
from jax.experimental import pallas as pl
from jax.experimental.pallas import tpu as pltpu


def _const_map(ndim):
    return lambda b: (0,) * ndim


def _mbconv1_kernel(x_ref, w1b_ref, b1p_ref, wdb_ref, bdp_ref,
                    wse1_ref, bse1_ref, wse2_ref, bse2_ref,
                    w3b_ref, b3p_ref, wib_ref, bip_ref, selh_ref,
                    o_ref, ypad_ref, *, H, W, C, K, stride, apply_identity):
    """One image per grid step.  x_ref: (H, W*C) lane-packed, o_ref: (Ho, Wo*Cout)."""
    f32 = jnp.float32
    p = (K - 1) // 2
    WC = W * C

    xm = x_ref[...]                                                # (H, WC)

    # --- conv_act: 1x1 conv (C->C, BN folded) + Swish, block-diag over W*C ---
    y = jnp.dot(xm, w1b_ref[...], preferred_element_type=f32) + b1p_ref[...]
    y = y * jax.nn.sigmoid(y)

    # --- dconv: depthwise KxK (stride 1, 'same') + BN + Swish ---------------
    # K banded matmuls: the W-shift lives in the band structure (MXU), the
    # H-shift is a sublane-offset read of the H-padded scratch.  Only the 2p
    # halo rows are zeroed; the interior is fully overwritten every step.
    if p > 0:
        ypad_ref[0:p, :] = jnp.zeros((p, WC), f32)
        ypad_ref[p + H:p + H + p, :] = jnp.zeros((p, WC), f32)
    ypad_ref[p:p + H, :] = y
    acc = jnp.zeros((H, WC), f32)
    for i in range(K):
        acc = acc + jnp.dot(ypad_ref[i:i + H, :], wdb_ref[i],
                            preferred_element_type=f32)
    d = acc + bdp_ref[...]
    d = d * jax.nn.sigmoid(d)

    # --- SE block ------------------------------------------------------------
    # The (W,C)->C lane reduction and the 1/(H*W) mean are folded into wse1 in
    # the wrapper; wse2 is lane-expanded so the gate lands directly packed.
    colsum = jnp.sum(d, axis=0, keepdims=True)                     # (1, WC)
    h1 = jnp.dot(colsum, wse1_ref[...], preferred_element_type=f32) + bse1_ref[...]
    h1 = jnp.maximum(h1, 0.0)
    g = jax.nn.sigmoid(jnp.dot(h1, wse2_ref[...], preferred_element_type=f32)
                       + bse2_ref[...])                            # (1, WC)
    se = d * g

    # --- conv_bn (stride folded into w3b / selh) + residual ------------------
    if stride == 1:
        se_s, x_s = se, xm
    else:
        se_s = jnp.dot(selh_ref[...], se, preferred_element_type=f32)  # (Ho, WC)
        x_s = jnp.dot(selh_ref[...], xm, preferred_element_type=f32)
    main = jnp.dot(se_s, w3b_ref[...], preferred_element_type=f32) + b3p_ref[...]
    if apply_identity:
        res = jnp.dot(x_s, wib_ref[...], preferred_element_type=f32) + bip_ref[...]
    else:
        res = x_s
    o_ref[...] = res + main                                        # (Ho, Wo*Cout)


def _pack_params(params, *, H, W, C, Cout, K, stride):
    """Fold weights into the lane-packed (W*C) layout (pure-JAX, tiny arrays)."""
    f32 = jnp.float32
    p = (K - 1) // 2
    Wo = (W - 1) // stride + 1
    Ho = (H - 1) // stride + 1
    eyeW = jnp.eye(W, dtype=f32)
    eyeC = jnp.eye(C, dtype=f32)

    w1b = jnp.kron(eyeW, params["w1"].astype(f32))                  # (WC, WC)
    b1p = jnp.tile(params["b1"].astype(f32), (1, W))                # (1, WC)

    wd = params["wd"].astype(f32)                                   # (K*K, C)
    bands = []
    for i in range(K):
        m = jnp.zeros((W * C, W * C), f32)
        for j in range(K):
            dj = j - p
            shift = (jnp.arange(W)[:, None]
                     == (jnp.arange(W)[None, :] + dj)).astype(f32)  # zero-pad in W
            m = m + jnp.kron(shift, jnp.diag(wd[i * K + j]))
        bands.append(m)
    wdb = jnp.stack(bands, axis=0)                                  # (K, WC, WC)
    bdp = jnp.tile(params["bd"].astype(f32), (1, W))                # (1, WC)

    s_sum = jnp.kron(jnp.ones((W, 1), f32), eyeC)                   # (WC, C)
    wse1e = (s_sum @ params["wse1"].astype(f32)) / float(H * W)     # (WC, Cr)
    bse1 = params["bse1"].astype(f32)                               # (1, Cr)
    wse2p = params["wse2"].astype(f32) @ s_sum.T                    # (Cr, WC)
    bse2p = jnp.tile(params["bse2"].astype(f32), (1, W))            # (1, WC)

    sel_w = (jnp.arange(W)[:, None]
             == (jnp.arange(Wo) * stride)[None, :]).astype(f32)     # (W, Wo)
    w3b = jnp.kron(sel_w, params["w3"].astype(f32))                 # (WC, Wo*Cout)
    b3p = jnp.tile(params["b3"].astype(f32), (1, Wo))
    wib = jnp.kron(sel_w, params["wi"].astype(f32))                 # (WC, Wo*Cout)
    bip = jnp.tile(params["bi"].astype(f32), (1, Wo))

    selh = (jnp.arange(H)[None, :]
            == (jnp.arange(Ho) * stride)[:, None]).astype(f32)      # (Ho, H)

    return [w1b, b1p, wdb, bdp, wse1e, bse1, wse2p, bse2p, w3b, b3p, wib, bip, selh]


@functools.partial(jax.jit, static_argnames=("kernel_size", "stride"))
def mbconv1_pallas(x_nchw, params, *, kernel_size, stride):
    f32 = jnp.float32
    B, C, H, W = x_nchw.shape
    K = kernel_size
    p = (K - 1) // 2
    Cout = params["w3"].shape[1]
    WC = W * C
    Ho = (H - 1) // stride + 1
    Wo = (W - 1) // stride + 1
    apply_identity = not (stride == 1 and Cout == C)

    # NCHW -> lane-packed (B, H, W*C) boundary glue (W*C = 128 here).
    x = jnp.transpose(x_nchw.astype(f32), (0, 2, 3, 1)).reshape(B, H, WC)

    plist = _pack_params(params, H=H, W=W, C=C, Cout=Cout, K=K, stride=stride)

    kern = functools.partial(_mbconv1_kernel, H=H, W=W, C=C, K=K,
                             stride=stride, apply_identity=apply_identity)

    # Weight BlockSpecs use constant index maps -> Pallas does not re-fetch
    # them across grid steps.
    in_specs = [pl.BlockSpec((None, H, WC), lambda b: (b, 0, 0))]
    in_specs += [pl.BlockSpec(a.shape, _const_map(a.ndim)) for a in plist]

    out_packed = pl.pallas_call(
        kern,
        out_shape=jax.ShapeDtypeStruct((B, Ho, Wo * Cout), f32),
        grid=(B,),
        in_specs=in_specs,
        out_specs=pl.BlockSpec((None, Ho, Wo * Cout), lambda b: (b, 0, 0)),
        scratch_shapes=[pltpu.VMEM((H + 2 * p, WC), f32)],
        compiler_params=pltpu.CompilerParams(
            dimension_semantics=("parallel",)),   # v7x: shard batch over 2 TCs
    )(x, *plist)

    out = out_packed.reshape(B, Ho, Wo, Cout)
    return jnp.transpose(out, (0, 3, 1, 2))                          # -> NCHW


def mbconv1_ref(x_nchw, params, *, kernel_size, stride):
    """Pure-JAX reference with identical math (for validation)."""
    x = jnp.transpose(x_nchw, (0, 2, 3, 1)).astype(jnp.float32)
    B, H, W, C = x.shape
    K = kernel_size
    p = (K - 1) // 2
    Cout = params["w3"].shape[1]

    xm = x.reshape(B, H * W, C)
    y = xm @ params["w1"] + params["b1"]
    y = y * jax.nn.sigmoid(y)
    y = y.reshape(B, H, W, C)

    yp = jnp.pad(y, ((0, 0), (p, p), (p, p), (0, 0)))
    wd = params["wd"].reshape(K, K, C)
    acc = jnp.zeros_like(y)
    for i in range(K):
        for j in range(K):
            acc = acc + yp[:, i:i + H, j:j + W, :] * wd[i, j]
    d = acc + params["bd"]
    d = d * jax.nn.sigmoid(d)

    pooled = d.mean(axis=(1, 2))                                    # (B, C)
    h1 = jnp.maximum(pooled @ params["wse1"] + params["bse1"], 0.0)
    g = jax.nn.sigmoid(h1 @ params["wse2"] + params["bse2"])
    se = d * g[:, None, None, :]

    main = se.reshape(B, H * W, C) @ params["w3"] + params["b3"]
    if stride == 1 and Cout == C:
        res = xm
    else:
        res = xm @ params["wi"] + params["bi"]
    out = (res + main).reshape(B, H, W, Cout)
    out = out[:, ::stride, ::stride, :]
    return jnp.transpose(out, (0, 3, 1, 2))


def make_params(key, in_channels, kernel_size, out_channels, se_ratio=4):
    """Deterministic synthetic parameters; BN stats folded into conv weights."""
    C, K, Cout = in_channels, kernel_size, out_channels
    Cr = max(1, C // se_ratio)
    ks = jax.random.split(key, 12)
    eps = 1e-5

    def bn_fold(k, w):
        n = w.shape[-1]
        kg, kb, km, kv = jax.random.split(k, 4)
        gamma = jax.random.uniform(kg, (n,), jnp.float32, 0.5, 1.5)
        beta = 0.1 * jax.random.normal(kb, (n,), jnp.float32)
        mean = 0.1 * jax.random.normal(km, (n,), jnp.float32)
        var = jax.random.uniform(kv, (n,), jnp.float32, 0.5, 1.5)
        s = gamma / jnp.sqrt(var + eps)
        return w * s, (beta - mean * s)[None, :]

    w1, b1 = bn_fold(ks[1], 0.2 * jax.random.normal(ks[0], (C, C), jnp.float32))
    wd, bd = bn_fold(ks[3], 0.2 * jax.random.normal(ks[2], (K * K, C), jnp.float32))
    wse1 = 0.3 * jax.random.normal(ks[4], (C, Cr), jnp.float32)
    bse1 = 0.1 * jax.random.normal(ks[5], (1, Cr), jnp.float32)
    wse2 = 0.3 * jax.random.normal(ks[6], (Cr, C), jnp.float32)
    bse2 = 0.1 * jax.random.normal(ks[7], (1, C), jnp.float32)
    w3, b3 = bn_fold(ks[9], 0.2 * jax.random.normal(ks[8], (C, Cout), jnp.float32))
    wi = 0.2 * jax.random.normal(ks[10], (C, Cout), jnp.float32)
    bi = 0.1 * jax.random.normal(ks[11], (1, Cout), jnp.float32)
    return dict(w1=w1, b1=b1, wd=wd, bd=bd, wse1=wse1, bse1=bse1,
                wse2=wse2, bse2=bse2, w3=w3, b3=b3, wi=wi, bi=bi)


if __name__ == "__main__":
    key = jax.random.PRNGKey(0)
    kx, kp = jax.random.split(key)

    # MBConv1(in_channels=8, kernel_size=3, out_channels=16, stride=2)
    B, C, H, W = 2, 8, 16, 16
    K, Cout, stride = 3, 16, 2

    x = jax.random.normal(kx, (B, C, H, W), jnp.float32)      # PyTorch-style NCHW
    params = make_params(kp, C, K, Cout)

    out = jax.block_until_ready(
        mbconv1_pallas(x, params, kernel_size=K, stride=stride))
    ref = jax.block_until_ready(
        mbconv1_ref(x, params, kernel_size=K, stride=stride))

    assert out.shape == (B, Cout, H // stride, W // stride), out.shape
    np.testing.assert_allclose(np.asarray(out), np.asarray(ref),
                               rtol=1e-2, atol=2e-2)
    print("KERNEL_OK")
</pallas_src>

<mosaic_0001>
module attributes {stable_mosaic.version = 11 : i64} {
  func.func @_mbconv1_kernel(%arg0: i32, %arg1: memref<1x16x128xf32, #tpu.memory_space<vmem>>, %arg2: memref<128x128xf32, #tpu.memory_space<vmem>>, %arg3: memref<1x128xf32, #tpu.memory_space<vmem>>, %arg4: memref<3x128x128xf32, #tpu.memory_space<vmem>>, %arg5: memref<1x128xf32, #tpu.memory_space<vmem>>, %arg6: memref<128x2xf32, #tpu.memory_space<vmem>>, %arg7: memref<1x2xf32, #tpu.memory_space<vmem>>, %arg8: memref<2x128xf32, #tpu.memory_space<vmem>>, %arg9: memref<1x128xf32, #tpu.memory_space<vmem>>, %arg10: memref<128x128xf32, #tpu.memory_space<vmem>>, %arg11: memref<1x128xf32, #tpu.memory_space<vmem>>, %arg12: memref<128x128xf32, #tpu.memory_space<vmem>>, %arg13: memref<1x128xf32, #tpu.memory_space<vmem>>, %arg14: memref<8x16xf32, #tpu.memory_space<vmem>>, %arg15: memref<1x8x128xf32, #tpu.memory_space<vmem>>, %arg16: memref<18x128xf32, #tpu.memory_space<vmem>>) attributes {dimension_semantics = [#tpu.dimension_semantics<parallel>], iteration_bounds = array<i64: 2>, scalar_prefetch = 0 : i64, scratch_operands = 1 : i64, tpu.core_type = #tpu.core_type<tc>, window_params = [{transform_indices = @transform_0, window_bounds = array<i64: 1, 16, 128>}, {pipeline_mode = #tpu.pipeline_mode<synchronous>, transform_indices = @transform_1, window_bounds = array<i64: 128, 128>}, {pipeline_mode = #tpu.pipeline_mode<synchronous>, transform_indices = @transform_2, window_bounds = array<i64: 1, 128>}, {pipeline_mode = #tpu.pipeline_mode<synchronous>, transform_indices = @transform_3, window_bounds = array<i64: 3, 128, 128>}, {pipeline_mode = #tpu.pipeline_mode<synchronous>, transform_indices = @transform_4, window_bounds = array<i64: 1, 128>}, {pipeline_mode = #tpu.pipeline_mode<synchronous>, transform_indices = @transform_5, window_bounds = array<i64: 128, 2>}, {pipeline_mode = #tpu.pipeline_mode<synchronous>, transform_indices = @transform_6, window_bounds = array<i64: 1, 2>}, {pipeline_mode = #tpu.pipeline_mode<synchronous>, transform_indices = @transform_7, window_bounds = array<i64: 2, 128>}, {pipeline_mode = #tpu.pipeline_mode<synchronous>, transform_indices = @transform_8, window_bounds = array<i64: 1, 128>}, {pipeline_mode = #tpu.pipeline_mode<synchronous>, transform_indices = @transform_9, window_bounds = array<i64: 128, 128>}, {pipeline_mode = #tpu.pipeline_mode<synchronous>, transform_indices = @transform_10, window_bounds = array<i64: 1, 128>}, {pipeline_mode = #tpu.pipeline_mode<synchronous>, transform_indices = @transform_11, window_bounds = array<i64: 128, 128>}, {pipeline_mode = #tpu.pipeline_mode<synchronous>, transform_indices = @transform_12, window_bounds = array<i64: 1, 128>}, {pipeline_mode = #tpu.pipeline_mode<synchronous>, transform_indices = @transform_13, window_bounds = array<i64: 8, 16>}, {transform_indices = @transform_14, window_bounds = array<i64: 1, 8, 128>}]} {
    %c0 = arith.constant 0 : index
    %c0_0 = arith.constant 0 : index
    %c0_1 = arith.constant 0 : index
    %0 = vector.load %arg1[%c0, %c0_0, %c0_1] : memref<1x16x128xf32, #tpu.memory_space<vmem>>, vector<1x16x128xf32>
    %1 = vector.shape_cast %0 : vector<1x16x128xf32> to vector<16x128xf32>
    %c0_2 = arith.constant 0 : index
    %c0_3 = arith.constant 0 : index
    %2 = vector.load %arg2[%c0_2, %c0_3] : memref<128x128xf32, #tpu.memory_space<vmem>>, vector<128x128xf32>
    %cst = arith.constant dense<0.000000e+00> : vector<16x128xf32>
    %3 = tpu.matmul %1, %2, %cst {dimension_numbers = #tpu.dot_dimension_numbers<[1], [0], [0], [1], [0, 0, 1, 1], [], []>} : vector<16x128xf32>, vector<128x128xf32>, vector<16x128xf32> -> vector<16x128xf32>
    %c0_4 = arith.constant 0 : index
    %c0_5 = arith.constant 0 : index
    %4 = vector.load %arg3[%c0_4, %c0_5] : memref<1x128xf32, #tpu.memory_space<vmem>>, vector<1x128xf32>
    %5 = vector.broadcast %4 : vector<1x128xf32> to vector<16x128xf32>
    %6 = arith.addf %3, %5 : vector<16x128xf32>
    %7 = arith.negf %6 : vector<16x128xf32>
    %8 = math.exp %7 : vector<16x128xf32>
    %cst_6 = arith.constant 1.000000e+00 : f32
    %9 = vector.broadcast %cst_6 : f32 to vector<16x128xf32>
    %10 = arith.addf %9, %8 : vector<16x128xf32>
    %11 = arith.divf %9, %10 : vector<16x128xf32>
    %12 = arith.mulf %6, %11 : vector<16x128xf32>
    %cst_7 = arith.constant 0.000000e+00 : f32
    %13 = vector.broadcast %cst_7 : f32 to vector<1x128xf32>
    %c0_8 = arith.constant 0 : index
    %c0_9 = arith.constant 0 : index
    %14 = vector.load %arg16[%c0_8, %c0_9] : memref<18x128xf32, #tpu.memory_space<vmem>>, vector<1x128xf32>
    tpu.vector_store %arg16[%c0_8, %c0_9], %13 {strides = array<i32>} : memref<18x128xf32, #tpu.memory_space<vmem>>, vector<1x128xf32>,
    %cst_10 = arith.constant 0.000000e+00 : f32
    %15 = vector.broadcast %cst_10 : f32 to vector<1x128xf32>
    %c17 = arith.constant 17 : index
    %c0_11 = arith.constant 0 : index
    %16 = vector.load %arg16[%c17, %c0_11] : memref<18x128xf32, #tpu.memory_space<vmem>>, vector<1x128xf32>
    tpu.vector_store %arg16[%c17, %c0_11], %15 {strides = array<i32>} : memref<18x128xf32, #tpu.memory_space<vmem>>, vector<1x128xf32>,
    %c1 = arith.constant 1 : index
    %c0_12 = arith.constant 0 : index
    %17 = vector.load %arg16[%c1, %c0_12] : memref<18x128xf32, #tpu.memory_space<vmem>>, vector<16x128xf32>
    tpu.vector_store %arg16[%c1, %c0_12], %12 {strides = array<i32>} : memref<18x128xf32, #tpu.memory_space<vmem>>, vector<16x128xf32>,
    %cst_13 = arith.constant 0.000000e+00 : f32
    %18 = vector.broadcast %cst_13 : f32 to vector<16x128xf32>
    %c0_14 = arith.constant 0 : index
    %c0_15 = arith.constant 0 : index
    %19 = vector.load %arg16[%c0_14, %c0_15] : memref<18x128xf32, #tpu.memory_space<vmem>>, vector<16x128xf32>
    %c0_16 = arith.constant 0 : index
    %c0_17 = arith.constant 0 : index
    %c0_18 = arith.constant 0 : index
    %20 = vector.load %arg4[%c0_16, %c0_17, %c0_18] : memref<3x128x128xf32, #tpu.memory_space<vmem>>, vector<1x128x128xf32>
    %21 = vector.shape_cast %20 : vector<1x128x128xf32> to vector<128x128xf32>
    %cst_19 = arith.constant dense<0.000000e+00> : vector<16x128xf32>
    %22 = tpu.matmul %19, %21, %cst_19 {dimension_numbers = #tpu.dot_dimension_numbers<[1], [0], [0], [1], [0, 0, 1, 1], [], []>} : vector<16x128xf32>, vector<128x128xf32>, vector<16x128xf32> -> vector<16x128xf32>
    %23 = arith.addf %18, %22 : vector<16x128xf32>
    %c1_20 = arith.constant 1 : index
    %c0_21 = arith.constant 0 : index
    %24 = vector.load %arg16[%c1_20, %c0_21] : memref<18x128xf32, #tpu.memory_space<vmem>>, vector<16x128xf32>
    %c1_22 = arith.constant 1 : index
    %c0_23 = arith.constant 0 : index
    %c0_24 = arith.constant 0 : index
    %25 = vector.load %arg4[%c1_22, %c0_23, %c0_24] : memref<3x128x128xf32, #tpu.memory_space<vmem>>, vector<1x128x128xf32>
    %26 = vector.shape_cast %25 : vector<1x128x128xf32> to vector<128x128xf32>
    %cst_25 = arith.constant dense<0.000000e+00> : vector<16x128xf32>
    %27 = tpu.matmul %24, %26, %cst_25 {dimension_numbers = #tpu.dot_dimension_numbers<[1], [0], [0], [1], [0, 0, 1, 1], [], []>} : vector<16x128xf32>, vector<128x128xf32>, vector<16x128xf32> -> vector<16x128xf32>
    %28 = arith.addf %23, %27 : vector<16x128xf32>
    %c2 = arith.constant 2 : index
    %c0_26 = arith.constant 0 : index
    %29 = vector.load %arg16[%c2, %c0_26] : memref<18x128xf32, #tpu.memory_space<vmem>>, vector<16x128xf32>
    %c2_27 = arith.constant 2 : index
    %c0_28 = arith.constant 0 : index
    %c0_29 = arith.constant 0 : index
    %30 = vector.load %arg4[%c2_27, %c0_28, %c0_29] : memref<3x128x128xf32, #tpu.memory_space<vmem>>, vector<1x128x128xf32>
    %31 = vector.shape_cast %30 : vector<1x128x128xf32> to vector<128x128xf32>
    %cst_30 = arith.constant dense<0.000000e+00> : vector<16x128xf32>
    %32 = tpu.matmul %29, %31, %cst_30 {dimension_numbers = #tpu.dot_dimension_numbers<[1], [0], [0], [1], [0, 0, 1, 1], [], []>} : vector<16x128xf32>, vector<128x128xf32>, vector<16x128xf32> -> vector<16x128xf32>
    %33 = arith.addf %28, %32 : vector<16x128xf32>
    %c0_31 = arith.constant 0 : index
    %c0_32 = arith.constant 0 : index
    %34 = vector.load %arg5[%c0_31, %c0_32] : memref<1x128xf32, #tpu.memory_space<vmem>>, vector<1x128xf32>
    %35 = vector.broadcast %34 : vector<1x128xf32> to vector<16x128xf32>
    %36 = arith.addf %33, %35 : vector<16x128xf32>
    %37 = arith.negf %36 : vector<16x128xf32>
    %38 = math.exp %37 : vector<16x128xf32>
    %cst_33 = arith.constant 1.000000e+00 : f32
    %39 = vector.broadcast %cst_33 : f32 to vector<16x128xf32>
    %40 = arith.addf %39, %38 : vector<16x128xf32>
    %41 = arith.divf %39, %40 : vector<16x128xf32>
    %42 = arith.mulf %36, %41 : vector<16x128xf32>
    %cst_34 = arith.constant dense<0.000000e+00> : vector<128xf32>
    %43 = vector.multi_reduction <add>, %42, %cst_34 [0] : vector<16x128xf32> to vector<128xf32>
    %44 = vector.shape_cast %43 : vector<128xf32> to vector<1x128xf32>
    %c0_35 = arith.constant 0 : index
    %c0_36 = arith.constant 0 : index
    %45 = vector.load %arg6[%c0_35, %c0_36] : memref<128x2xf32, #tpu.memory_space<vmem>>, vector<128x2xf32>
    %cst_37 = arith.constant dense<0.000000e+00> : vector<1x2xf32>
    %46 = tpu.matmul %44, %45, %cst_37 {dimension_numbers = #tpu.dot_dimension_numbers<[1], [0], [0], [1], [0, 0, 1, 1], [], []>} : vector<1x128xf32>, vector<128x2xf32>, vector<1x2xf32> -> vector<1x2xf32>
    %c0_38 = arith.constant 0 : index
    %c0_39 = arith.constant 0 : index
    %47 = vector.load %arg7[%c0_38, %c0_39] : memref<1x2xf32, #tpu.memory_space<vmem>>, vector<1x2xf32>
    %48 = arith.addf %46, %47 : vector<1x2xf32>
    %cst_40 = arith.constant 0.000000e+00 : f32
    %49 = vector.broadcast %cst_40 : f32 to vector<1x2xf32>
    %50 = arith.maximumf %48, %49 : vector<1x2xf32>
    %c0_41 = arith.constant 0 : index
    %c0_42 = arith.constant 0 : index
    %51 = vector.load %arg8[%c0_41, %c0_42] : memref<2x128xf32, #tpu.memory_space<vmem>>, vector<2x128xf32>
    %cst_43 = arith.constant dense<0.000000e+00> : vector<1x128xf32>
    %52 = tpu.matmul %50, %51, %cst_43 {dimension_numbers = #tpu.dot_dimension_numbers<[1], [0], [0], [1], [0, 0, 1, 1], [], []>} : vector<1x2xf32>, vector<2x128xf32>, vector<1x128xf32> -> vector<1x128xf32>
    %c0_44 = arith.constant 0 : index
    %c0_45 = arith.constant 0 : index
    %53 = vector.load %arg9[%c0_44, %c0_45] : memref<1x128xf32, #tpu.memory_space<vmem>>, vector<1x128xf32>
    %54 = arith.addf %52, %53 : vector<1x128xf32>
    %55 = arith.negf %54 : vector<1x128xf32>
    %56 = math.exp %55 : vector<1x128xf32>
    %cst_46 = arith.constant 1.000000e+00 : f32
    %57 = vector.broadcast %cst_46 : f32 to vector<1x128xf32>
    %58 = arith.addf %57, %56 : vector<1x128xf32>
    %59 = arith.divf %57, %58 : vector<1x128xf32>
    %60 = vector.broadcast %59 : vector<1x128xf32> to vector<16x128xf32>
    %61 = arith.mulf %42, %60 : vector<16x128xf32>
    %c0_47 = arith.constant 0 : index
    %c0_48 = arith.constant 0 : index
    %62 = vector.load %arg14[%c0_47, %c0_48] : memref<8x16xf32, #tpu.memory_space<vmem>>, vector<8x16xf32>
    %cst_49 = arith.constant dense<0.000000e+00> : vector<8x128xf32>
    %63 = tpu.matmul %62, %61, %cst_49 {dimension_numbers = #tpu.dot_dimension_numbers<[1], [0], [0], [1], [0, 0, 1, 1], [], []>} : vector<8x16xf32>, vector<16x128xf32>, vector<8x128xf32> -> vector<8x128xf32>
    %c0_50 = arith.constant 0 : index
    %c0_51 = arith.constant 0 : index
    %64 = vector.load %arg14[%c0_50, %c0_51] : memref<8x16xf32, #tpu.memory_space<vmem>>, vector<8x16xf32>
    %cst_52 = arith.constant dense<0.000000e+00> : vector<8x128xf32>
    %65 = tpu.matmul %64, %1, %cst_52 {dimension_numbers = #tpu.dot_dimension_numbers<[1], [0], [0], [1], [0, 0, 1, 1], [], []>} : vector<8x16xf32>, vector<16x128xf32>, vector<8x128xf32> -> vector<8x128xf32>
    %c0_53 = arith.constant 0 : index
    %c0_54 = arith.constant 0 : index
    %66 = vector.load %arg10[%c0_53, %c0_54] : memref<128x128xf32, #tpu.memory_space<vmem>>, vector<128x128xf32>
    %cst_55 = arith.constant dense<0.000000e+00> : vector<8x128xf32>
    %67 = tpu.matmul %63, %66, %cst_55 {dimension_numbers = #tpu.dot_dimension_numbers<[1], [0], [0], [1], [0, 0, 1, 1], [], []>} : vector<8x128xf32>, vector<128x128xf32>, vector<8x128xf32> -> vector<8x128xf32>
    %c0_56 = arith.constant 0 : index
    %c0_57 = arith.constant 0 : index
    %68 = vector.load %arg11[%c0_56, %c0_57] : memref<1x128xf32, #tpu.memory_space<vmem>>, vector<1x128xf32>
    %69 = vector.broadcast %68 : vector<1x128xf32> to vector<8x128xf32>
    %70 = arith.addf %67, %69 : vector<8x128xf32>
    %c0_58 = arith.constant 0 : index
    %c0_59 = arith.constant 0 : index
    %71 = vector.load %arg12[%c0_58, %c0_59] : memref<128x128xf32, #tpu.memory_space<vmem>>, vector<128x128xf32>
    %cst_60 = arith.constant dense<0.000000e+00> : vector<8x128xf32>
    %72 = tpu.matmul %65, %71, %cst_60 {dimension_numbers = #tpu.dot_dimension_numbers<[1], [0], [0], [1], [0, 0, 1, 1], [], []>} : vector<8x128xf32>, vector<128x128xf32>, vector<8x128xf32> -> vector<8x128xf32>
    %c0_61 = arith.constant 0 : index
    %c0_62 = arith.constant 0 : index
    %73 = vector.load %arg13[%c0_61, %c0_62] : memref<1x128xf32, #tpu.memory_space<vmem>>, vector<1x128xf32>
    %74 = vector.broadcast %73 : vector<1x128xf32> to vector<8x128xf32>
    %75 = arith.addf %72, %74 : vector<8x128xf32>
    %76 = arith.addf %75, %70 : vector<8x128xf32>
    %c0_63 = arith.constant 0 : index
    %c0_64 = arith.constant 0 : index
    %c0_65 = arith.constant 0 : index
    %77 = vector.load %arg15[%c0_63, %c0_64, %c0_65] : memref<1x8x128xf32, #tpu.memory_space<vmem>>, vector<1x8x128xf32>
    %78 = vector.shape_cast %77 : vector<1x8x128xf32> to vector<8x128xf32>
    %79 = vector.shape_cast %76 : vector<8x128xf32> to vector<1x8x128xf32>
    tpu.vector_store %arg15[%c0_63, %c0_64, %c0_65], %79 {strides = array<i32>} : memref<1x8x128xf32, #tpu.memory_space<vmem>>, vector<1x8x128xf32>,
    return
  }
  func.func @transform_0(%arg0: i32) -> (i32, i32, i32) {
    %c0_i32 = arith.constant 0 : i32
    %c0_i32_0 = arith.constant 0 : i32
    %c0_i32_1 = arith.constant 0 : i32
    return %arg0, %c0_i32, %c0_i32_0 : i32, i32, i32
  }
  func.func @transform_1(%arg0: i32) -> (i32, i32) {
    %c0_i32 = arith.constant 0 : i32
    %c0_i32_0 = arith.constant 0 : i32
    %c0_i32_1 = arith.constant 0 : i32
    return %c0_i32, %c0_i32_0 : i32, i32
  }
  func.func @transform_2(%arg0: i32) -> (i32, i32) {
    %c0_i32 = arith.constant 0 : i32
    %c0_i32_0 = arith.constant 0 : i32
    %c0_i32_1 = arith.constant 0 : i32
    return %c0_i32, %c0_i32_0 : i32, i32
  }
  func.func @transform_3(%arg0: i32) -> (i32, i32, i32) {
    %c0_i32 = arith.constant 0 : i32
    %c0_i32_0 = arith.constant 0 : i32
    %c0_i32_1 = arith.constant 0 : i32
    %c0_i32_2 = arith.constant 0 : i32
    return %c0_i32, %c0_i32_0, %c0_i32_1 : i32, i32, i32
  }
  func.func @transform_4(%arg0: i32) -> (i32, i32) {
    %c0_i32 = arith.constant 0 : i32
    %c0_i32_0 = arith.constant 0 : i32
    %c0_i32_1 = arith.constant 0 : i32
    return %c0_i32, %c0_i32_0 : i32, i32
  }
  func.func @transform_5(%arg0: i32) -> (i32, i32) {
    %c0_i32 = arith.constant 0 : i32
    %c0_i32_0 = arith.constant 0 : i32
    %c0_i32_1 = arith.constant 0 : i32
    return %c0_i32, %c0_i32_0 : i32, i32
  }
  func.func @transform_6(%arg0: i32) -> (i32, i32) {
    %c0_i32 = arith.constant 0 : i32
    %c0_i32_0 = arith.constant 0 : i32
    %c0_i32_1 = arith.constant 0 : i32
    return %c0_i32, %c0_i32_0 : i32, i32
  }
  func.func @transform_7(%arg0: i32) -> (i32, i32) {
    %c0_i32 = arith.constant 0 : i32
    %c0_i32_0 = arith.constant 0 : i32
    %c0_i32_1 = arith.constant 0 : i32
    return %c0_i32, %c0_i32_0 : i32, i32
  }
  func.func @transform_8(%arg0: i32) -> (i32, i32) {
    %c0_i32 = arith.constant 0 : i32
    %c0_i32_0 = arith.constant 0 : i32
    %c0_i32_1 = arith.constant 0 : i32
    return %c0_i32, %c0_i32_0 : i32, i32
  }
  func.func @transform_9(%arg0: i32) -> (i32, i32) {
    %c0_i32 = arith.constant 0 : i32
    %c0_i32_0 = arith.constant 0 : i32
    %c0_i32_1 = arith.constant 0 : i32
    return %c0_i32, %c0_i32_0 : i32, i32
  }
  func.func @transform_10(%arg0: i32) -> (i32, i32) {
    %c0_i32 = arith.constant 0 : i32
    %c0_i32_0 = arith.constant 0 : i32
    %c0_i32_1 = arith.constant 0 : i32
    return %c0_i32, %c0_i32_0 : i32, i32
  }
  func.func @transform_11(%arg0: i32) -> (i32, i32) {
    %c0_i32 = arith.constant 0 : i32
    %c0_i32_0 = arith.constant 0 : i32
    %c0_i32_1 = arith.constant 0 : i32
    return %c0_i32, %c0_i32_0 : i32, i32
  }
  func.func @transform_12(%arg0: i32) -> (i32, i32) {
    %c0_i32 = arith.constant 0 : i32
    %c0_i32_0 = arith.constant 0 : i32
    %c0_i32_1 = arith.constant 0 : i32
    return %c0_i32, %c0_i32_0 : i32, i32
  }
  func.func @transform_13(%arg0: i32) -> (i32, i32) {
    %c0_i32 = arith.constant 0 : i32
    %c0_i32_0 = arith.constant 0 : i32
    %c0_i32_1 = arith.constant 0 : i32
    return %c0_i32, %c0_i32_0 : i32, i32
  }
  func.func @transform_14(%arg0: i32) -> (i32, i32, i32) {
    %c0_i32 = arith.constant 0 : i32
    %c0_i32_0 = arith.constant 0 : i32
    %c0_i32_1 = arith.constant 0 : i32
    return %arg0, %c0_i32, %c0_i32_0 : i32, i32, i32
  }
}

</mosaic_0001>

<llo_original>
// kernel: mbconv1_pallas.1
$region0: #{mbconv1_pallas.1}
  #allocation0 [shape = 'u32[]', space=smem, size = 0x4, offset = 0x4, fixed_abs, tag = 'smem constant byte address 0x4 - core index']
  #allocation1 [shape = 'u32[144,128]{1,0:T(1,128)}', space=vmem, size = 0x12000, scoped, tag = 'internal scratch']
  #allocation2 [shape = 'f32[18,128]{1,0:T(8,128)}', space=vmem, size = 0x3000, scoped, tag = 'scratch operand']
  %s0 = inlined_call_operand.vmem [shape: f32[2,16,128], index: 0, kind: input, shape index: {}]
  %s1 = inlined_call_operand.vmem [shape: f32[128,128], index: 1, kind: input, shape index: {}]
  %s2 = inlined_call_operand.vmem [shape: f32[1,128], index: 2, kind: input, shape index: {}]
  %s3 = inlined_call_operand.vmem [shape: f32[3,128,128], index: 3, kind: input, shape index: {}]
  %s4 = inlined_call_operand.vmem [shape: f32[1,128], index: 4, kind: input, shape index: {}]
  %s5 = inlined_call_operand.vmem [shape: f32[128,2], index: 5, kind: input, shape index: {}]
  %s6 = inlined_call_operand.vmem [shape: f32[1,2], index: 6, kind: input, shape index: {}]
  %s7 = inlined_call_operand.vmem [shape: f32[2,128], index: 7, kind: input, shape index: {}]
  %s8 = inlined_call_operand.vmem [shape: f32[1,128], index: 8, kind: input, shape index: {}]
  %s9 = inlined_call_operand.vmem [shape: f32[128,128], index: 9, kind: input, shape index: {}]
  %s10 = inlined_call_operand.vmem [shape: f32[1,128], index: 10, kind: input, shape index: {}]
  %s11 = inlined_call_operand.vmem [shape: f32[128,128], index: 11, kind: input, shape index: {}]
  %s12 = inlined_call_operand.vmem [shape: f32[1,128], index: 12, kind: input, shape index: {}]
  %s13 = inlined_call_operand.vmem [shape: f32[8,16], index: 13, kind: input, shape index: {}]
  %s14 = inlined_call_operand.vmem [shape: f32[2,8,128], index: 14, kind: output, shape index: {}]
  %s15 = sld [smem:[#allocation0]]
  $region89: #{mbconv1_pallas.1} parent=0
    _
  %s17 = ssub.s32 1, %s15
  %s18 = scalar_select 0, %s17, %s15
  loop: start=0, step=1, limit=4
  $region2: #{mbconv1_pallas.1} parent=0 // loop_pre_header
    _
  $region3: #{mbconv1_pallas.1} parent=0 // loop_header
    %s20 = sphi 0, %s24
    %p21 = scmp.ge.s32.totalorder %s20, 4
    %s30 = sphi 0, %s32
    %s33 = sphi 0, %s30
    %s34 = sphi 0, %s33
    %s50 = sphi 0, %s34
    %s54 = sphi 0, %s54
    %s56 = sphi 0, %s54
    %s57 = sphi 0, %s56
    %s71 = sphi 0, %s57
    %s75 = sphi 0, %s75
    %s77 = sphi 0, %s75
    %s78 = sphi 0, %s77
    %s92 = sphi 0, %s78
    %s96 = sphi 0, %s96
    %s98 = sphi 0, %s96
    %s99 = sphi 0, %s98
    %s113 = sphi 0, %s99
    %s117 = sphi 0, %s117
    %s119 = sphi 0, %s117
    %s120 = sphi 0, %s119
    %s134 = sphi 0, %s120
    %s138 = sphi 0, %s138
    %s140 = sphi 0, %s138
    %s141 = sphi 0, %s140
    %s155 = sphi 0, %s141
    %s159 = sphi 0, %s159
    %s161 = sphi 0, %s159
    %s162 = sphi 0, %s161
    %s176 = sphi 0, %s162
    %s180 = sphi 0, %s180
    %s182 = sphi 0, %s180
    %s183 = sphi 0, %s182
    %s197 = sphi 0, %s183
    %s201 = sphi 0, %s201
    %s203 = sphi 0, %s201
    %s204 = sphi 0, %s203
    %s218 = sphi 0, %s204
    %s222 = sphi 0, %s222
    %s224 = sphi 0, %s222
    %s225 = sphi 0, %s224
    %s239 = sphi 0, %s225
    %s243 = sphi 0, %s243
    %s245 = sphi 0, %s243
    %s246 = sphi 0, %s245
    %s260 = sphi 0, %s246
    %s264 = sphi 0, %s264
    %s266 = sphi 0, %s264
    %s267 = sphi 0, %s266
    %s281 = sphi 0, %s267
    %s285 = sphi 0, %s285
    %s287 = sphi 0, %s285
    %s288 = sphi 0, %s287
    %s302 = sphi 0, %s288
    %s306 = sphi 0, %s306
    %s308 = sphi 0, %s306
    %s309 = sphi 0, %s308
    %s323 = sphi 0, %s309
    %s329 = sphi 0, %s331
    %s332 = sphi 0, %s329
    %s333 = sphi 0, %s332
    %s349 = sphi 0, %s333
  $region4: #{mbconv1_pallas.1} parent=0 // loop_header_branch
    %23 = sbr.rel (%p21) target = $region8
  $region5: #{mbconv1_pallas.1} parent=0 // loop_body
    %s25 = ssub.s32 %s20, 1
    %s26 = ssub.s32 %s20, 2
    %s27 = sadd.s32 %s20, 1
    %s28 = ssub.s32 %s20, %s27
    %p29 = scmp.eq.s32.totalorder %s28, 0
    %s31 = sadd.s32 %s30, 1
    %s32 = scalar_select %p29, %s30, %s31
    %p35 = pneg %p29
    %p36 = scmp.eq.s32.totalorder %s20, 1
    %p37 = por %p35, %p36
    %p38 = scmp.ne.s32.totalorder %s30, %s33
    %p39 = scmp.eq.s32.totalorder %s20, 0
    %p40 = por %p38, %p39
    %p41 = scmp.ne.s32.totalorder %s30, %s33
    %p42 = scmp.eq.s32.totalorder %s25, 1
    %p43 = por %p41, %p42
    %p44 = scmp.ne.s32.totalorder %s33, %s34
    %p45 = scmp.eq.s32.totalorder %s25, 0
    %p46 = por %p44, %p45
    %p47 = scmp.ne.s32.totalorder %s33, %s34
    %p48 = scmp.eq.s32.totalorder %s26, 1
    %p49 = por %p47, %p48
    %p51 = scmp.ne.s32.totalorder %s34, %s50
    %p52 = scmp.eq.s32.totalorder %s26, 0
    %p53 = por %p51, %p52
    %s55 = sadd.s32 %s54, 1
    %p58 = scmp.eq.s32.totalorder %s20, 1
    %p59 = scmp.ne.s32.totalorder %s54, %s56
    %p60 = scmp.eq.s32.totalorder %s20, 0
    %p61 = por %p59, %p60
    %p62 = scmp.ne.s32.totalorder %s54, %s56
    %p63 = scmp.eq.s32.totalorder %s25, 1
    %p64 = por %p62, %p63
    %p65 = scmp.ne.s32.totalorder %s56, %s57
    %p66 = scmp.eq.s32.totalorder %s25, 0
    %p67 = por %p65, %p66
    %p68 = scmp.ne.s32.totalorder %s56, %s57
    %p69 = scmp.eq.s32.totalorder %s26, 1
    %p70 = por %p68, %p69
    %p72 = scmp.ne.s32.totalorder %s57, %s71
    %p73 = scmp.eq.s32.totalorder %s26, 0
    %p74 = por %p72, %p73
    %s76 = sadd.s32 %s75, 1
    %p79 = scmp.eq.s32.totalorder %s20, 1
    %p80 = scmp.ne.s32.totalorder %s75, %s77
    %p81 = scmp.eq.s32.totalorder %s20, 0
    %p82 = por %p80, %p81
    %p83 = scmp.ne.s32.totalorder %s75, %s77
    %p84 = scmp.eq.s32.totalorder %s25, 1
    %p85 = por %p83, %p84
    %p86 = scmp.ne.s32.totalorder %s77, %s78
    %p87 = scmp.eq.s32.totalorder %s25, 0
    %p88 = por %p86, %p87
    %p89 = scmp.ne.s32.totalorder %s77, %s78
    %p90 = scmp.eq.s32.totalorder %s26, 1
    %p91 = por %p89, %p90
    %p93 = scmp.ne.s32.totalorder %s78, %s92
    %p94 = scmp.eq.s32.totalorder %s26, 0
    %p95 = por %p93, %p94
    %s97 = sadd.s32 %s96, 1
    %p100 = scmp.eq.s32.totalorder %s20, 1
    %p101 = scmp.ne.s32.totalorder %s96, %s98
    %p102 = scmp.eq.s32.totalorder %s20, 0
    %p103 = por %p101, %p102
    %p104 = scmp.ne.s32.totalorder %s96, %s98
    %p105 = scmp.eq.s32.totalorder %s25, 1
    %p106 = por %p104, %p105
    %p107 = scmp.ne.s32.totalorder %s98, %s99
    %p108 = scmp.eq.s32.totalorder %s25, 0
    %p109 = por %p107, %p108
    %p110 = scmp.ne.s32.totalorder %s98, %s99
    %p111 = scmp.eq.s32.totalorder %s26, 1
    %p112 = por %p110, %p111
    %p114 = scmp.ne.s32.totalorder %s99, %s113
    %p115 = scmp.eq.s32.totalorder %s26, 0
    %p116 = por %p114, %p115
    %s118 = sadd.s32 %s117, 1
    %p121 = scmp.eq.s32.totalorder %s20, 1
    %p122 = scmp.ne.s32.totalorder %s117, %s119
    %p123 = scmp.eq.s32.totalorder %s20, 0
    %p124 = por %p122, %p123
    %p125 = scmp.ne.s32.totalorder %s117, %s119
    %p126 = scmp.eq.s32.totalorder %s25, 1
    %p127 = por %p125, %p126
    %p128 = scmp.ne.s32.totalorder %s119, %s120
    %p129 = scmp.eq.s32.totalorder %s25, 0
    %p130 = por %p128, %p129
    %p131 = scmp.ne.s32.totalorder %s119, %s120
    %p132 = scmp.eq.s32.totalorder %s26, 1
    %p133 = por %p131, %p132
    %p135 = scmp.ne.s32.totalorder %s120, %s134
    %p136 = scmp.eq.s32.totalorder %s26, 0
    %p137 = por %p135, %p136
    %s139 = sadd.s32 %s138, 1
    %p142 = scmp.eq.s32.totalorder %s20, 1
    %p143 = scmp.ne.s32.totalorder %s138, %s140
    %p144 = scmp.eq.s32.totalorder %s20, 0
    %p145 = por %p143, %p144
    %p146 = scmp.ne.s32.totalorder %s138, %s140
    %p147 = scmp.eq.s32.totalorder %s25, 1
    %p148 = por %p146, %p147
    %p149 = scmp.ne.s32.totalorder %s140, %s141
    %p150 = scmp.eq.s32.totalorder %s25, 0
    %p151 = por %p149, %p150
    %p152 = scmp.ne.s32.totalorder %s140, %s141
    %p153 = scmp.eq.s32.totalorder %s26, 1
    %p154 = por %p152, %p153
    %p156 = scmp.ne.s32.totalorder %s141, %s155
    %p157 = scmp.eq.s32.totalorder %s26, 0
    %p158 = por %p156, %p157
    %s160 = sadd.s32 %s159, 1
    %p163 = scmp.eq.s32.totalorder %s20, 1
    %p164 = scmp.ne.s32.totalorder %s159, %s161
    %p165 = scmp.eq.s32.totalorder %s20, 0
    %p166 = por %p164, %p165
    %p167 = scmp.ne.s32.totalorder %s159, %s161
    %p168 = scmp.eq.s32.totalorder %s25, 1
    %p169 = por %p167, %p168
    %p170 = scmp.ne.s32.totalorder %s161, %s162
    %p171 = scmp.eq.s32.totalorder %s25, 0
    %p172 = por %p170, %p171
    %p173 = scmp.ne.s32.totalorder %s161, %s162
    %p174 = scmp.eq.s32.totalorder %s26, 1
    %p175 = por %p173, %p174
    %p177 = scmp.ne.s32.totalorder %s162, %s176
    %p178 = scmp.eq.s32.totalorder %s26, 0
    %p179 = por %p177, %p178
    %s181 = sadd.s32 %s180, 1
    %p184 = scmp.eq.s32.totalorder %s20, 1
    %p185 = scmp.ne.s32.totalorder %s180, %s182
    %p186 = scmp.eq.s32.totalorder %s20, 0
    %p187 = por %p185, %p186
    %p188 = scmp.ne.s32.totalorder %s180, %s182
    %p189 = scmp.eq.s32.totalorder %s25, 1
    %p190 = por %p188, %p189
    %p191 = scmp.ne.s32.totalorder %s182, %s183
    %p192 = scmp.eq.s32.totalorder %s25, 0
    %p193 = por %p191, %p192
    %p194 = scmp.ne.s32.totalorder %s182, %s183
    %p195 = scmp.eq.s32.totalorder %s26, 1
    %p196 = por %p194, %p195
    %p198 = scmp.ne.s32.totalorder %s183, %s197
    %p199 = scmp.eq.s32.totalorder %s26, 0
    %p200 = por %p198, %p199
    %s202 = sadd.s32 %s201, 1
    %p205 = scmp.eq.s32.totalorder %s20, 1
    %p206 = scmp.ne.s32.totalorder %s201, %s203
    %p207 = scmp.eq.s32.totalorder %s20, 0
    %p208 = por %p206, %p207
    %p209 = scmp.ne.s32.totalorder %s201, %s203
    %p210 = scmp.eq.s32.totalorder %s25, 1
    %p211 = por %p209, %p210
    %p212 = scmp.ne.s32.totalorder %s203, %s204
    %p213 = scmp.eq.s32.totalorder %s25, 0
    %p214 = por %p212, %p213
    %p215 = scmp.ne.s32.totalorder %s203, %s204
    %p216 = scmp.eq.s32.totalorder %s26, 1
    %p217 = por %p215, %p216
    %p219 = scmp.ne.s32.totalorder %s204, %s218
    %p220 = scmp.eq.s32.totalorder %s26, 0
    %p221 = por %p219, %p220
    %s223 = sadd.s32 %s222, 1
    %p226 = scmp.eq.s32.totalorder %s20, 1
    %p227 = scmp.ne.s32.totalorder %s222, %s224
    %p228 = scmp.eq.s32.totalorder %s20, 0
    %p229 = por %p227, %p228
    %p230 = scmp.ne.s32.totalorder %s222, %s224
    %p231 = scmp.eq.s32.totalorder %s25, 1
    %p232 = por %p230, %p231
    %p233 = scmp.ne.s32.totalorder %s224, %s225
    %p234 = scmp.eq.s32.totalorder %s25, 0
    %p235 = por %p233, %p234
    %p236 = scmp.ne.s32.totalorder %s224, %s225
    %p237 = scmp.eq.s32.totalorder %s26, 1
    %p238 = por %p236, %p237
    %p240 = scmp.ne.s32.totalorder %s225, %s239
    %p241 = scmp.eq.s32.totalorder %s26, 0
    %p242 = por %p240, %p241
    %s244 = sadd.s32 %s243, 1
    %p247 = scmp.eq.s32.totalorder %s20, 1
    %p248 = scmp.ne.s32.totalorder %s243, %s245
    %p249 = scmp.eq.s32.totalorder %s20, 0
    %p250 = por %p248, %p249
    %p251 = scmp.ne.s32.totalorder %s243, %s245
    %p252 = scmp.eq.s32.totalorder %s25, 1
    %p253 = por %p251, %p252
    %p254 = scmp.ne.s32.totalorder %s245, %s246
    %p255 = scmp.eq.s32.totalorder %s25, 0
    %p256 = por %p254, %p255
    %p257 = scmp.ne.s32.totalorder %s245, %s246
    %p258 = scmp.eq.s32.totalorder %s26, 1
    %p259 = por %p257, %p258
    %p261 = scmp.ne.s32.totalorder %s246, %s260
    %p262 = scmp.eq.s32.totalorder %s26, 0
    %p263 = por %p261, %p262
    %s265 = sadd.s32 %s264, 1
    %p268 = scmp.eq.s32.totalorder %s20, 1
    %p269 = scmp.ne.s32.totalorder %s264, %s266
    %p270 = scmp.eq.s32.totalorder %s20, 0
    %p271 = por %p269, %p270
    %p272 = scmp.ne.s32.totalorder %s264, %s266
    %p273 = scmp.eq.s32.totalorder %s25, 1
    %p274 = por %p272, %p273
    %p275 = scmp.ne.s32.totalorder %s266, %s267
    %p276 = scmp.eq.s32.totalorder %s25, 0
    %p277 = por %p275, %p276
    %p278 = scmp.ne.s32.totalorder %s266, %s267
    %p279 = scmp.eq.s32.totalorder %s26, 1
    %p280 = por %p278, %p279
    %p282 = scmp.ne.s32.totalorder %s267, %s281
    %p283 = scmp.eq.s32.totalorder %s26, 0
    %p284 = por %p282, %p283
    %s286 = sadd.s32 %s285, 1
    %p289 = scmp.eq.s32.totalorder %s20, 1
    %p290 = scmp.ne.s32.totalorder %s285, %s287
    %p291 = scmp.eq.s32.totalorder %s20, 0
    %p292 = por %p290, %p291
    %p293 = scmp.ne.s32.totalorder %s285, %s287
    %p294 = scmp.eq.s32.totalorder %s25, 1
    %p295 = por %p293, %p294
    %p296 = scmp.ne.s32.totalorder %s287, %s288
    %p297 = scmp.eq.s32.totalorder %s25, 0
    %p298 = por %p296, %p297
    %p299 = scmp.ne.s32.totalorder %s287, %s288
    %p300 = scmp.eq.s32.totalorder %s26, 1
    %p301 = por %p299, %p300
    %p303 = scmp.ne.s32.totalorder %s288, %s302
    %p304 = scmp.eq.s32.totalorder %s26, 0
    %p305 = por %p303, %p304
    %s307 = sadd.s32 %s306, 1
    %p310 = scmp.eq.s32.totalorder %s20, 1
    %p311 = scmp.ne.s32.totalorder %s306, %s308
    %p312 = scmp.eq.s32.totalorder %s20, 0
    %p313 = por %p311, %p312
    %p314 = scmp.ne.s32.totalorder %s306, %s308
    %p315 = scmp.eq.s32.totalorder %s25, 1
    %p316 = por %p314, %p315
    %p317 = scmp.ne.s32.totalorder %s308, %s309
    %p318 = scmp.eq.s32.totalorder %s25, 0
    %p319 = por %p317, %p318
    %p320 = scmp.ne.s32.totalorder %s308, %s309
    %p321 = scmp.eq.s32.totalorder %s26, 1
    %p322 = por %p320, %p321
    %p324 = scmp.ne.s32.totalorder %s309, %s323
    %p325 = scmp.eq.s32.totalorder %s26, 0
    %p326 = por %p324, %p325
    %s327 = ssub.s32 %s20, %s27
    %p328 = scmp.eq.s32.totalorder %s327, 0
    %s330 = sadd.s32 %s329, 1
    %s331 = scalar_select %p328, %s329, %s330
    %p334 = pneg %p328
    %p335 = scmp.eq.s32.totalorder %s20, 1
    %p336 = por %p334, %p335
    %p337 = scmp.ne.s32.totalorder %s329, %s332
    %p338 = scmp.eq.s32.totalorder %s20, 0
    %p339 = por %p337, %p338
    %p340 = scmp.ne.s32.totalorder %s329, %s332
    %p341 = scmp.eq.s32.totalorder %s25, 1
    %p342 = por %p340, %p341
    %p343 = scmp.ne.s32.totalorder %s332, %s333
    %p344 = scmp.eq.s32.totalorder %s25, 0
    %p345 = por %p343, %p344
    %p346 = scmp.ne.s32.totalorder %s332, %s333
    %p347 = scmp.eq.s32.totalorder %s26, 1
    %p348 = por %p346, %p347
    %p350 = scmp.ne.s32.totalorder %s333, %s349
    %p351 = scmp.eq.s32.totalorder %s26, 0
    %p352 = por %p350, %p351
    %p353 = scmp.le.s32.totalorder 1, %s20
    %p354 = scmp.lt.s32.totalorder %s20, 3
    %p355 = pnand %p353, %p354
    %p356 = pneg %p355
    // Predicated region
    $region9: #{mbconv1_pallas.1} parent=5 // pred_check
      _
    $region10: #{mbconv1_pallas.1} parent=5 // pred_check_branch
      %358 = sbr.rel (%p355) target = $region12
    $region11: #{mbconv1_pallas.1} parent=5 // pred_region
      %s359 = ssub.s32 %s20, 1
      // Predicated region
      $region13: #{mbconv1_pallas.1} parent=11 // pred_check
        %p360 = pneg %p67
      $region14: #{mbconv1_pallas.1} parent=11 // pred_check_branch
        %362 = sbr.rel (%p360) target = $region16
      $region15: #{mbconv1_pallas.1} parent=11 // pred_region
        _
      $region16: #{mbconv1_pallas.1} parent=11 // pred_fallthru
        _
      // Predicated region
      $region17: #{mbconv1_pallas.1} parent=11 // pred_check
        %p363 = pneg %p88
      $region18: #{mbconv1_pallas.1} parent=11 // pred_check_branch
        %365 = sbr.rel (%p363) target = $region20
      $region19: #{mbconv1_pallas.1} parent=11 // pred_region
        _
      $region20: #{mbconv1_pallas.1} parent=11 // pred_fallthru
        _
      // Predicated region
      $region21: #{mbconv1_pallas.1} parent=11 // pred_check
        %p366 = pneg %p109
      $region22: #{mbconv1_pallas.1} parent=11 // pred_check_branch
        %368 = sbr.rel (%p366) target = $region24
      $region23: #{mbconv1_pallas.1} parent=11 // pred_region
        _
      $region24: #{mbconv1_pallas.1} parent=11 // pred_fallthru
        _
      // Predicated region
      $region25: #{mbconv1_pallas.1} parent=11 // pred_check
        %p369 = pneg %p130
      $region26: #{mbconv1_pallas.1} parent=11 // pred_check_branch
        %371 = sbr.rel (%p369) target = $region28
      $region27: #{mbconv1_pallas.1} parent=11 // pred_region
        _
      $region28: #{mbconv1_pallas.1} parent=11 // pred_fallthru
        _
      // Predicated region
      $region29: #{mbconv1_pallas.1} parent=11 // pred_check
        %p372 = pneg %p151
      $region30: #{mbconv1_pallas.1} parent=11 // pred_check_branch
        %374 = sbr.rel (%p372) target = $region32
      $region31: #{mbconv1_pallas.1} parent=11 // pred_region
        _
      $region32: #{mbconv1_pallas.1} parent=11 // pred_fallthru
        _
      // Predicated region
      $region33: #{mbconv1_pallas.1} parent=11 // pred_check
        %p375 = pneg %p172
      $region34: #{mbconv1_pallas.1} parent=11 // pred_check_branch
        %377 = sbr.rel (%p375) target = $region36
      $region35: #{mbconv1_pallas.1} parent=11 // pred_region
        _
      $region36: #{mbconv1_pallas.1} parent=11 // pred_fallthru
        _
      // Predicated region
      $region37: #{mbconv1_pallas.1} parent=11 // pred_check
        %p378 = pneg %p193
      $region38: #{mbconv1_pallas.1} parent=11 // pred_check_branch
        %380 = sbr.rel (%p378) target = $region40
      $region39: #{mbconv1_pallas.1} parent=11 // pred_region
        _
      $region40: #{mbconv1_pallas.1} parent=11 // pred_fallthru
        _
      // Predicated region
      $region41: #{mbconv1_pallas.1} parent=11 // pred_check
        %p381 = pneg %p214
      $region42: #{mbconv1_pallas.1} parent=11 // pred_check_branch
        %383 = sbr.rel (%p381) target = $region44
      $region43: #{mbconv1_pallas.1} parent=11 // pred_region
        _
      $region44: #{mbconv1_pallas.1} parent=11 // pred_fallthru
        _
      // Predicated region
      $region45: #{mbconv1_pallas.1} parent=11 // pred_check
        %p384 = pneg %p235
      $region46: #{mbconv1_pallas.1} parent=11 // pred_check_branch
        %386 = sbr.rel (%p384) target = $region48
      $region47: #{mbconv1_pallas.1} parent=11 // pred_region
        _
      $region48: #{mbconv1_pallas.1} parent=11 // pred_fallthru
        _
      // Predicated region
      $region49: #{mbconv1_pallas.1} parent=11 // pred_check
        %p387 = pneg %p256
      $region50: #{mbconv1_pallas.1} parent=11 // pred_check_branch
        %389 = sbr.rel (%p387) target = $region52
      $region51: #{mbconv1_pallas.1} parent=11 // pred_region
        _
      $region52: #{mbconv1_pallas.1} parent=11 // pred_fallthru
        _
      // Predicated region
      $region53: #{mbconv1_pallas.1} parent=11 // pred_check
        %p390 = pneg %p277
      $region54: #{mbconv1_pallas.1} parent=11 // pred_check_branch
        %392 = sbr.rel (%p390) target = $region56
      $region55: #{mbconv1_pallas.1} parent=11 // pred_region
        _
      $region56: #{mbconv1_pallas.1} parent=11 // pred_fallthru
        _
      // Predicated region
      $region57: #{mbconv1_pallas.1} parent=11 // pred_check
        %p393 = pneg %p298
      $region58: #{mbconv1_pallas.1} parent=11 // pred_check_branch
        %395 = sbr.rel (%p393) target = $region60
      $region59: #{mbconv1_pallas.1} parent=11 // pred_region
        _
      $region60: #{mbconv1_pallas.1} parent=11 // pred_fallthru
        _
      // Predicated region
      $region61: #{mbconv1_pallas.1} parent=11 // pred_check
        %p396 = pneg %p319
      $region62: #{mbconv1_pallas.1} parent=11 // pred_check_branch
        %398 = sbr.rel (%p396) target = $region64
      $region63: #{mbconv1_pallas.1} parent=11 // pred_region
        _
      $region64: #{mbconv1_pallas.1} parent=11 // pred_fallthru
        _
    $region12: #{mbconv1_pallas.1} parent=5 // pred_fallthru
      _
    %p399 = scmp.lt.s32.totalorder %s20, 2
    // Predicated region
    $region65: #{mbconv1_pallas.1} parent=5 // pred_check
      %p400 = pneg %p399
    $region66: #{mbconv1_pallas.1} parent=5 // pred_check_branch
      %402 = sbr.rel (%p400) target = $region68
    $region67: #{mbconv1_pallas.1} parent=5 // pred_region
      // Predicated region
      $region69: #{mbconv1_pallas.1} parent=67 // pred_check
        %p403 = pneg %p40
      $region70: #{mbconv1_pallas.1} parent=67 // pred_check_branch
        %405 = sbr.rel (%p403) target = $region72
      $region71: #{mbconv1_pallas.1} parent=67 // pred_region
        %p406 = scmp.lt.s32.totalorder %s20, 1
        %s407 = scalar_select %p406, %s20, 1
        %s408 = smul.addr %s407, 2
        %s409 = smul.addr %s408, 8
        %s410 = scalar_lea.vmem %s0, %s409
      $region72: #{mbconv1_pallas.1} parent=67 // pred_fallthru
        _
    $region68: #{mbconv1_pallas.1} parent=5 // pred_fallthru
      _
    %p411 = scmp.le.s32.totalorder 1, %s20
    %p412 = scmp.lt.s32.totalorder %s20, 3
    %p413 = pnand %p411, %p412
    %p414 = pneg %p413
    // Predicated region
    $region73: #{mbconv1_pallas.1} parent=5 // pred_check
      _
    $region74: #{mbconv1_pallas.1} parent=5 // pred_check_branch
      %416 = sbr.rel (%p413) target = $region76
    $region75: #{mbconv1_pallas.1} parent=5 // pred_region
      %s417 = ssub.s32 %s20, 1
      %p418 = scmp.lt.s32.totalorder %s25, 1
      %s419 = scalar_select %p418, %s25, 1
      %s420 = smul.addr %s419, 2
      %s421 = smul.addr %s420, 8
      %s422 = scalar_lea.vmem %s0, %s421
      %p423 = pneg %p46
      %p424 = pneg %p43
      %p425 = pneg %p67
      %p426 = pneg %p64
      %p427 = pneg %p88
      %p428 = pneg %p85
      %p429 = pneg %p109
      %p430 = pneg %p106
      %p431 = pneg %p130
      %p432 = pneg %p127
      %p433 = pneg %p151
      %p434 = pneg %p148
      %p435 = pneg %p172
      %p436 = pneg %p169
      %p437 = pneg %p193
      %p438 = pneg %p190
      %p439 = pneg %p214
      %p440 = pneg %p211
      %p441 = pneg %p235
      %p442 = pneg %p232
      %p443 = pneg %p256
      %p444 = pneg %p253
      %p445 = pneg %p277
      %p446 = pneg %p274
      %p447 = pneg %p298
      %p448 = pneg %p295
      %p449 = pneg %p319
      %p450 = pneg %p316
      %p451 = pneg %p345
      %p452 = pneg %p342
      %p453 = scmp.lt.s32.totalorder %s25, 1
      %s454 = scalar_select %p453, %s25, 1
      %s455 = smul.addr %s454, 8
      %s456 = scalar_lea.vmem %s14, %s455
      %p457 = scmp.lt.s32.totalorder %s25, 1
      %s458 = scalar_select %p457, %s25, 1
      %s459 = smul.addr %s458, 2
      %s460 = smul.addr %s459, 8
      %s461 = scalar_lea.vmem %s0, %s460
      %p462 = scmp.lt.s32.totalorder %s25, 1
      %s463 = scalar_select %p462, %s25, 1
      %s464 = smul.addr %s463, 8
      %s465 = scalar_lea.vmem %s14, %s464
      %v466 = vld [vmem:[%s461] sm:$0xff]
      %v467 = vld [vmem:[%s461 + $0x8] sm:$0xff]
      %v468 = vld [vmem:[%s1] sm:$0xff]
      %v469 = vld [vmem:[%s1 + $0x8] sm:$0xff]
      %v470 = vld [vmem:[%s1 + $0x10] sm:$0xff]
      %v471 = vld [vmem:[%s1 + $0x18] sm:$0xff]
      %v472 = vld [vmem:[%s1 + $0x20] sm:$0xff]
      %v473 = vld [vmem:[%s1 + $0x28] sm:$0xff]
      %v474 = vld [vmem:[%s1 + $0x30] sm:$0xff]
      %v475 = vld [vmem:[%s1 + $0x38] sm:$0xff]
      %v476 = vld [vmem:[%s1 + $0x40] sm:$0xff]
      %v477 = vld [vmem:[%s1 + $0x48] sm:$0xff]
      %v478 = vld [vmem:[%s1 + $0x50] sm:$0xff]
      %v479 = vld [vmem:[%s1 + $0x58] sm:$0xff]
      %v480 = vld [vmem:[%s1 + $0x60] sm:$0xff]
      %v481 = vld [vmem:[%s1 + $0x68] sm:$0xff]
      %v482 = vld [vmem:[%s1 + $0x70] sm:$0xff]
      %v483 = vld [vmem:[%s1 + $0x78] sm:$0xff]
      %v484 = vld [vmem:[%s2] sm:$0x1]
      %v486 = vlaneseq
      %v487 = vshrl.u32 %v486, 7
      %v488 = vsub.s32 0, %v487
      %v489 = vrot.slane %v484, %v488
      %491 = vmatprep.subr.mxu0 0.0
      %492 = vmatpush1.msra.mxu0 %v468
      %493 = vmatprep.subr.mxu0 0.0
      %494 = vmatpush1.msra.mxu0 %v469
      %495 = vmatprep.subr.mxu0 0.0
      %496 = vmatpush1.msra.mxu0 %v470
      %497 = vmatprep.subr.mxu0 0.0
      %498 = vmatpush1.msra.mxu0 %v471
      %499 = vmatprep.subr.mxu0 0.0
      %500 = vmatpush1.msra.mxu0 %v472
      %501 = vmatprep.subr.mxu0 0.0
      %502 = vmatpush1.msra.mxu0 %v473
      %503 = vmatprep.subr.mxu0 0.0
      %504 = vmatpush1.msra.mxu0 %v474
      %505 = vmatprep.subr.mxu0 0.0
      %506 = vmatpush1.msra.mxu0 %v475
      %507 = vmatprep.subr.mxu0 0.0
      %508 = vmatpush1.msra.mxu0 %v476
      %509 = vmatprep.subr.mxu0 0.0
      %510 = vmatpush1.msra.mxu0 %v477
      %511 = vmatprep.subr.mxu0 0.0
      %512 = vmatpush1.msra.mxu0 %v478
      %513 = vmatprep.subr.mxu0 0.0
      %514 = vmatpush1.msra.mxu0 %v479
      %515 = vmatprep.subr.mxu0 0.0
      %516 = vmatpush1.msra.mxu0 %v480
      %517 = vmatprep.subr.mxu0 0.0
      %518 = vmatpush1.msra.mxu0 %v481
      %519 = vmatprep.subr.mxu0 0.0
      %520 = vmatpush1.msra.mxu0 %v482
      %521 = vmatprep.subr.mxu0 0.0
      %522 = vmatpush1.msra.mxu0 %v483
      %523 = vmatprep.subr.mxu0 0.0
      %524 = vmatpush1.msra.mxu0 0.0
      %525 = vmatprep.subr.mxu0 0.0
      %526 = vmatpush1.msra.mxu0 0.0
      %527 = vmatprep.subr.mxu0 0.0
      %528 = vmatpush1.msra.mxu0 0.0
      %529 = vmatprep.subr.mxu0 0.0
      %530 = vmatpush1.msra.mxu0 0.0
      %531 = vmatprep.subr.mxu0 0.0
      %532 = vmatpush1.msra.mxu0 0.0
      %533 = vmatprep.subr.mxu0 0.0
      %534 = vmatpush1.msra.mxu0 0.0
      %535 = vmatprep.subr.mxu0 0.0
      %536 = vmatpush1.msra.mxu0 0.0
      %537 = vmatprep.subr.mxu0 0.0
      %538 = vmatpush1.msra.mxu0 0.0
      %539 = vmatprep.subr.mxu0 0.0
      %540 = vmatpush1.msra.mxu0 0.0
      %541 = vmatprep.subr.mxu0 0.0
      %542 = vmatpush1.msra.mxu0 0.0
      %543 = vmatprep.subr.mxu0 0.0
      %544 = vmatpush1.msra.mxu0 0.0
      %545 = vmatprep.subr.mxu0 0.0
      %546 = vmatpush1.msra.mxu0 0.0
      %547 = vmatprep.subr.mxu0 0.0
      %548 = vmatpush1.msra.mxu0 0.0
      %549 = vmatprep.subr.mxu0 0.0
      %550 = vmatpush1.msra.mxu0 0.0
      %551 = vmatprep.subr.mxu0 0.0
      %552 = vmatpush1.msra.mxu0 0.0
      %553 = vmatprep.subr.mxu0 0.0
      %554 = vmatpush1.msra.mxu0 0.0
      %555 = vmatprep.mubr.f32.mxu0 0.0
      %556 = vmatmul.mubr.f32.gmra.mrb[0].mxu0 %v466
      %v557 = vpop.f32.mrb[0].mxu0
      %v558 = vadd.f32 %v489, %v557
      %v559 = vpop.f32.mrb[0].mxu0
      %560 = vmatprep.mubr.f32.mxu0 0.0
      %561 = vmatmul.mubr.f32.gmra.mrb[0].mxu0 %v467
      %v562 = vpop.f32.mrb[0].mxu0
      %v563 = vadd.f32 %v489, %v562
      %v564 = vpop.f32.mrb[0].mxu0
      %565 = vdwg.mxu0
      %v566 = vxor.u32 %v558, 2147483648
      %v567 = vxor.u32 %v563, 2147483648
      %v568 = vmul.f32 %v566, 1.442695
      %v569 = vpow.pop %v568
      %v570 = vmul.f32 %v567, 1.442695
      %v571 = vpow.pop %v570
      %v572 = vadd.f32 %v569, 1.0
      %v573 = vadd.f32 %v571, 1.0
      %v574 = vrcp.pop %v572
      %v575 = vmul.f32 1.0, %v574
      %v576 = vrcp.pop %v573
      %v577 = vmul.f32 1.0, %v576
      %v578 = vmul.f32 %v558, %v575
      %v579 = vmul.f32 %v563, %v577
      %580 = vst [vmem:[#allocation2] sm:$0x1] 0.0
      %581 = vst [vmem:[#allocation2 + $0x11] sm:$0x1] 0.0
      %582 = vst [vmem:[#allocation2 + $0x1] sm:$0xff] %v578
      %583 = vst [vmem:[#allocation2 + $0x9] sm:$0xff] %v579
      %v584 = vld [vmem:[#allocation2] sm:$0xff]
      %v585 = vld [vmem:[#allocation2 + $0x8] sm:$0xff]
      %v586 = vld [vmem:[%s3] sm:$0xff]
      %v587 = vld [vmem:[%s3 + $0x8] sm:$0xff]
      %v588 = vld [vmem:[%s3 + $0x10] sm:$0xff]
      %v589 = vld [vmem:[%s3 + $0x18] sm:$0xff]
      %v590 = vld [vmem:[%s3 + $0x20] sm:$0xff]
      %v591 = vld [vmem:[%s3 + $0x28] sm:$0xff]
      %v592 = vld [vmem:[%s3 + $0x30] sm:$0xff]
      %v593 = vld [vmem:[%s3 + $0x38] sm:$0xff]
      %v594 = vld [vmem:[%s3 + $0x40] sm:$0xff]
      %v595 = vld [vmem:[%s3 + $0x48] sm:$0xff]
      %v596 = vld [vmem:[%s3 + $0x50] sm:$0xff]
      %v597 = vld [vmem:[%s3 + $0x58] sm:$0xff]
      %v598 = vld [vmem:[%s3 + $0x60] sm:$0xff]
      %v599 = vld [vmem:[%s3 + $0x68] sm:$0xff]
      %v600 = vld [vmem:[%s3 + $0x70] sm:$0xff]
      %v601 = vld [vmem:[%s3 + $0x78] sm:$0xff]
      %v602 = vld [vmem:[#allocation2 + $0x1] sm:$0xff]
      %v603 = vld [vmem:[#allocation2 + $0x9] sm:$0xff]
      %s604 = scalar_lea.vmem %s3, 128
      %v605 = vld [vmem:[%s604] sm:$0xff]
      %v606 = vld [vmem:[%s604 + $0x8] sm:$0xff]
      %v607 = vld [vmem:[%s604 + $0x10] sm:$0xff]
      %v608 = vld [vmem:[%s604 + $0x18] sm:$0xff]
      %v609 = vld [vmem:[%s604 + $0x20] sm:$0xff]
      %v610 = vld [vmem:[%s604 + $0x28] sm:$0xff]
      %v611 = vld [vmem:[%s604 + $0x30] sm:$0xff]
      %v612 = vld [vmem:[%s604 + $0x38] sm:$0xff]
      %v613 = vld [vmem:[%s604 + $0x40] sm:$0xff]
      %v614 = vld [vmem:[%s604 + $0x48] sm:$0xff]
      %v615 = vld [vmem:[%s604 + $0x50] sm:$0xff]
      %v616 = vld [vmem:[%s604 + $0x58] sm:$0xff]
      %v617 = vld [vmem:[%s604 + $0x60] sm:$0xff]
      %v618 = vld [vmem:[%s604 + $0x68] sm:$0xff]
      %v619 = vld [vmem:[%s604 + $0x70] sm:$0xff]
      %v620 = vld [vmem:[%s604 + $0x78] sm:$0xff]
      %621 = vmatprep.subr.mxu0 0.0
      %622 = vmatpush1.msra.mxu0 %v605
      %623 = vmatprep.subr.mxu0 0.0
      %624 = vmatpush1.msra.mxu0 %v606
      %625 = vmatprep.subr.mxu0 0.0
      %626 = vmatpush1.msra.mxu0 %v607
      %627 = vmatprep.subr.mxu0 0.0
      %628 = vmatpush1.msra.mxu0 %v608
      %629 = vmatprep.subr.mxu0 0.0
      %630 = vmatpush1.msra.mxu0 %v609
      %631 = vmatprep.subr.mxu0 0.0
      %632 = vmatpush1.msra.mxu0 %v610
      %633 = vmatprep.subr.mxu0 0.0
      %634 = vmatpush1.msra.mxu0 %v611
      %635 = vmatprep.subr.mxu0 0.0
      %636 = vmatpush1.msra.mxu0 %v612
      %637 = vmatprep.subr.mxu0 0.0
      %638 = vmatpush1.msra.mxu0 %v613
      %639 = vmatprep.subr.mxu0 0.0
      %640 = vmatpush1.msra.mxu0 %v614
      %641 = vmatprep.subr.mxu0 0.0
      %642 = vmatpush1.msra.mxu0 %v615
      %643 = vmatprep.subr.mxu0 0.0
      %644 = vmatpush1.msra.mxu0 %v616
      %645 = vmatprep.subr.mxu0 0.0
      %646 = vmatpush1.msra.mxu0 %v617
      %647 = vmatprep.subr.mxu0 0.0
      %648 = vmatpush1.msra.mxu0 %v618
      %649 = vmatprep.subr.mxu0 0.0
      %650 = vmatpush1.msra.mxu0 %v619
      %651 = vmatprep.subr.mxu0 0.0
      %652 = vmatpush1.msra.mxu0 %v620
      %653 = vmatprep.subr.mxu0 0.0
      %654 = vmatpush1.msra.mxu0 0.0
      %655 = vmatprep.subr.mxu0 0.0
      %656 = vmatpush1.msra.mxu0 0.0
      %657 = vmatprep.subr.mxu0 0.0
      %658 = vmatpush1.msra.mxu0 0.0
      %659 = vmatprep.subr.mxu0 0.0
      %660 = vmatpush1.msra.mxu0 0.0
      %661 = vmatprep.subr.mxu0 0.0
      %662 = vmatpush1.msra.mxu0 0.0
      %663 = vmatprep.subr.mxu0 0.0
      %664 = vmatpush1.msra.mxu0 0.0
      %665 = vmatprep.subr.mxu0 0.0
      %666 = vmatpush1.msra.mxu0 0.0
      %667 = vmatprep.subr.mxu0 0.0
      %668 = vmatpush1.msra.mxu0 0.0
      %669 = vmatprep.subr.mxu0 0.0
      %670 = vmatpush1.msra.mxu0 0.0
      %671 = vmatprep.subr.mxu0 0.0
      %672 = vmatpush1.msra.mxu0 0.0
      %673 = vmatprep.subr.mxu0 0.0
      %674 = vmatpush1.msra.mxu0 0.0
      %675 = vmatprep.subr.mxu0 0.0
      %676 = vmatpush1.msra.mxu0 0.0
      %677 = vmatprep.subr.mxu0 0.0
      %678 = vmatpush1.msra.mxu0 0.0
      %679 = vmatprep.subr.mxu0 0.0
      %680 = vmatpush1.msra.mxu0 0.0
      %681 = vmatprep.subr.mxu0 0.0
      %682 = vmatpush1.msra.mxu0 0.0
      %683 = vmatprep.subr.mxu0 0.0
      %684 = vmatpush1.msra.mxu0 0.0
      %685 = vmatprep.mubr.f32.mxu0 0.0
      %686 = vmatmul.mubr.f32.gmra.mrb[0].mxu0 %v602
      %v687 = vpop.f32.mrb[0].mxu0
      %v688 = vadd.f32 0.0, %v687
      %v689 = vpop.f32.mrb[0].mxu0
      %690 = vmatprep.mubr.f32.mxu0 0.0
      %691 = vmatmul.mubr.f32.gmra.mrb[0].mxu0 %v603
      %v692 = vpop.f32.mrb[0].mxu0
      %v693 = vadd.f32 0.0, %v692
      %v694 = vpop.f32.mrb[0].mxu0
      %695 = vdwg.mxu0
      %696 = vmatprep.subr.mxu0 0.0
      %697 = vmatpush1.msra.mxu0 %v586
      %698 = vmatprep.subr.mxu0 0.0
      %699 = vmatpush1.msra.mxu0 %v587
      %700 = vmatprep.subr.mxu0 0.0
      %701 = vmatpush1.msra.mxu0 %v588
      %702 = vmatprep.subr.mxu0 0.0
      %703 = vmatpush1.msra.mxu0 %v589
      %704 = vmatprep.subr.mxu0 0.0
      %705 = vmatpush1.msra.mxu0 %v590
      %706 = vmatprep.subr.mxu0 0.0
      %707 = vmatpush1.msra.mxu0 %v591
      %708 = vmatprep.subr.mxu0 0.0
      %709 = vmatpush1.msra.mxu0 %v592
      %710 = vmatprep.subr.mxu0 0.0
      %711 = vmatpush1.msra.mxu0 %v593
      %712 = vmatprep.subr.mxu0 0.0
      %713 = vmatpush1.msra.mxu0 %v594
      %714 = vmatprep.subr.mxu0 0.0
      %715 = vmatpush1.msra.mxu0 %v595
      %716 = vmatprep.subr.mxu0 0.0
      %717 = vmatpush1.msra.mxu0 %v596
      %718 = vmatprep.subr.mxu0 0.0
      %719 = vmatpush1.msra.mxu0 %v597
      %720 = vmatprep.subr.mxu0 0.0
      %721 = vmatpush1.msra.mxu0 %v598
      %722 = vmatprep.subr.mxu0 0.0
      %723 = vmatpush1.msra.mxu0 %v599
      %724 = vmatprep.subr.mxu0 0.0
      %725 = vmatpush1.msra.mxu0 %v600
      %726 = vmatprep.subr.mxu0 0.0
      %727 = vmatpush1.msra.mxu0 %v601
      %728 = vmatprep.subr.mxu0 0.0
      %729 = vmatpush1.msra.mxu0 0.0
      %730 = vmatprep.subr.mxu0 0.0
      %731 = vmatpush1.msra.mxu0 0.0
      %732 = vmatprep.subr.mxu0 0.0
      %733 = vmatpush1.msra.mxu0 0.0
      %734 = vmatprep.subr.mxu0 0.0
      %735 = vmatpush1.msra.mxu0 0.0
      %736 = vmatprep.subr.mxu0 0.0
      %737 = vmatpush1.msra.mxu0 0.0
      %738 = vmatprep.subr.mxu0 0.0
      %739 = vmatpush1.msra.mxu0 0.0
      %740 = vmatprep.subr.mxu0 0.0
      %741 = vmatpush1.msra.mxu0 0.0
      %742 = vmatprep.subr.mxu0 0.0
      %743 = vmatpush1.msra.mxu0 0.0
      %744 = vmatprep.subr.mxu0 0.0
      %745 = vmatpush1.msra.mxu0 0.0
      %746 = vmatprep.subr.mxu0 0.0
      %747 = vmatpush1.msra.mxu0 0.0
      %748 = vmatprep.subr.mxu0 0.0
      %749 = vmatpush1.msra.mxu0 0.0
      %750 = vmatprep.subr.mxu0 0.0
      %751 = vmatpush1.msra.mxu0 0.0
      %752 = vmatprep.subr.mxu0 0.0
      %753 = vmatpush1.msra.mxu0 0.0
      %754 = vmatprep.subr.mxu0 0.0
      %755 = vmatpush1.msra.mxu0 0.0
      %756 = vmatprep.subr.mxu0 0.0
      %757 = vmatpush1.msra.mxu0 0.0
      %758 = vmatprep.subr.mxu0 0.0
      %759 = vmatpush1.msra.mxu0 0.0
      %760 = vmatprep.mubr.f32.mxu0 0.0
      %761 = vmatmul.mubr.f32.gmra.mrb[0].mxu0 %v584
      %v762 = vpop.f32.mrb[0].mxu0
      %v763 = vadd.f32 %v688, %v762
      %v764 = vpop.f32.mrb[0].mxu0
      %765 = vmatprep.mubr.f32.mxu0 0.0
      %766 = vmatmul.mubr.f32.gmra.mrb[0].mxu0 %v585
      %v767 = vpop.f32.mrb[0].mxu0
      %v768 = vadd.f32 %v693, %v767
      %v769 = vpop.f32.mrb[0].mxu0
      %770 = vdwg.mxu0
      %v771 = vld [vmem:[#allocation2 + $0x2] sm:$0xff]
      %v772 = vld [vmem:[#allocation2 + $0xa] sm:$0xff]
      %s773 = scalar_lea.vmem %s3, 256
      %v774 = vld [vmem:[%s773] sm:$0xff]
      %v775 = vld [vmem:[%s773 + $0x8] sm:$0xff]
      %v776 = vld [vmem:[%s773 + $0x10] sm:$0xff]
      %v777 = vld [vmem:[%s773 + $0x18] sm:$0xff]
      %v778 = vld [vmem:[%s773 + $0x20] sm:$0xff]
      %v779 = vld [vmem:[%s773 + $0x28] sm:$0xff]
      %v780 = vld [vmem:[%s773 + $0x30] sm:$0xff]
      %v781 = vld [vmem:[%s773 + $0x38] sm:$0xff]
      %v782 = vld [vmem:[%s773 + $0x40] sm:$0xff]
      %v783 = vld [vmem:[%s773 + $0x48] sm:$0xff]
      %v784 = vld [vmem:[%s773 + $0x50] sm:$0xff]
      %v785 = vld [vmem:[%s773 + $0x58] sm:$0xff]
      %v786 = vld [vmem:[%s773 + $0x60] sm:$0xff]
      %v787 = vld [vmem:[%s773 + $0x68] sm:$0xff]
      %v788 = vld [vmem:[%s773 + $0x70] sm:$0xff]
      %v789 = vld [vmem:[%s773 + $0x78] sm:$0xff]
      %790 = vmatprep.subr.mxu0 0.0
      %791 = vmatpush1.msra.mxu0 %v774
      %792 = vmatprep.subr.mxu0 0.0
      %793 = vmatpush1.msra.mxu0 %v775
      %794 = vmatprep.subr.mxu0 0.0
      %795 = vmatpush1.msra.mxu0 %v776
      %796 = vmatprep.subr.mxu0 0.0
      %797 = vmatpush1.msra.mxu0 %v777
      %798 = vmatprep.subr.mxu0 0.0
      %799 = vmatpush1.msra.mxu0 %v778
      %800 = vmatprep.subr.mxu0 0.0
      %801 = vmatpush1.msra.mxu0 %v779
      %802 = vmatprep.subr.mxu0 0.0
      %803 = vmatpush1.msra.mxu0 %v780
      %804 = vmatprep.subr.mxu0 0.0
      %805 = vmatpush1.msra.mxu0 %v781
      %806 = vmatprep.subr.mxu0 0.0
      %807 = vmatpush1.msra.mxu0 %v782
      %808 = vmatprep.subr.mxu0 0.0
      %809 = vmatpush1.msra.mxu0 %v783
      %810 = vmatprep.subr.mxu0 0.0
      %811 = vmatpush1.msra.mxu0 %v784
      %812 = vmatprep.subr.mxu0 0.0
      %813 = vmatpush1.msra.mxu0 %v785
      %814 = vmatprep.subr.mxu0 0.0
      %815 = vmatpush1.msra.mxu0 %v786
      %816 = vmatprep.subr.mxu0 0.0
      %817 = vmatpush1.msra.mxu0 %v787
      %818 = vmatprep.subr.mxu0 0.0
      %819 = vmatpush1.msra.mxu0 %v788
      %820 = vmatprep.subr.mxu0 0.0
      %821 = vmatpush1.msra.mxu0 %v789
      %822 = vmatprep.subr.mxu0 0.0
      %823 = vmatpush1.msra.mxu0 0.0
      %824 = vmatprep.subr.mxu0 0.0
      %825 = vmatpush1.msra.mxu0 0.0
      %826 = vmatprep.subr.mxu0 0.0
      %827 = vmatpush1.msra.mxu0 0.0
      %828 = vmatprep.subr.mxu0 0.0
      %829 = vmatpush1.msra.mxu0 0.0
      %830 = vmatprep.subr.mxu0 0.0
      %831 = vmatpush1.msra.mxu0 0.0
      %832 = vmatprep.subr.mxu0 0.0
      %833 = vmatpush1.msra.mxu0 0.0
      %834 = vmatprep.subr.mxu0 0.0
      %835 = vmatpush1.msra.mxu0 0.0
      %836 = vmatprep.subr.mxu0 0.0
      %837 = vmatpush1.msra.mxu0 0.0
      %838 = vmatprep.subr.mxu0 0.0
      %839 = vmatpush1.msra.mxu0 0.0
      %840 = vmatprep.subr.mxu0 0.0
      %841 = vmatpush1.msra.mxu0 0.0
      %842 = vmatprep.subr.mxu0 0.0
      %843 = vmatpush1.msra.mxu0 0.0
      %844 = vmatprep.subr.mxu0 0.0
      %845 = vmatpush1.msra.mxu0 0.0
      %846 = vmatprep.subr.mxu0 0.0
      %847 = vmatpush1.msra.mxu0 0.0
      %848 = vmatprep.subr.mxu0 0.0
      %849 = vmatpush1.msra.mxu0 0.0
      %850 = vmatprep.subr.mxu0 0.0
      %851 = vmatpush1.msra.mxu0 0.0
      %852 = vmatprep.subr.mxu0 0.0
      %853 = vmatpush1.msra.mxu0 0.0
      %854 = vmatprep.mubr.f32.mxu0 0.0
      %855 = vmatmul.mubr.f32.gmra.mrb[0].mxu0 %v771
      %v856 = vpop.f32.mrb[0].mxu0
      %v857 = vadd.f32 0.0, %v856
      %v858 = vpop.f32.mrb[0].mxu0
      %859 = vmatprep.mubr.f32.mxu0 0.0
      %860 = vmatmul.mubr.f32.gmra.mrb[0].mxu0 %v772
      %v861 = vpop.f32.mrb[0].mxu0
      %v862 = vadd.f32 0.0, %v861
      %v863 = vpop.f32.mrb[0].mxu0
      %864 = vdwg.mxu0
      %v865 = vadd.f32 %v763, %v857
      %v866 = vadd.f32 %v768, %v862
      %v867 = vld [vmem:[%s4] sm:$0x1]
      %v869 = vlaneseq
      %v870 = vshrl.u32 %v869, 7
      %v871 = vsub.s32 0, %v870
      %v872 = vrot.slane %v867, %v871
      %v874 = vadd.f32 %v865, %v872
      %v875 = vadd.f32 %v866, %v872
      %v876 = vxor.u32 %v874, 2147483648
      %v877 = vxor.u32 %v875, 2147483648
      %v878 = vmul.f32 %v876, 1.442695
      %v879 = vpow.pop %v878
      %v880 = vmul.f32 %v877, 1.442695
      %v881 = vpow.pop %v880
      %v882 = vadd.f32 %v879, 1.0
      %v883 = vadd.f32 %v881, 1.0
      %v884 = vrcp.pop %v882
      %v885 = vmul.f32 1.0, %v884
      %v886 = vrcp.pop %v883
      %v887 = vmul.f32 1.0, %v886
      %v888 = vmul.f32 %v874, %v885
      %v889 = vmul.f32 %v875, %v887
      %v890 = vadd.f32 %v888, %v889
      %v891 = vrot.slane %v890, 4
      %v892 = vadd.f32 %v890, %v891
      %v893 = vrot.slane %v892, 2
      %v894 = vadd.f32 %v892, %v893
      %v895 = vrot.slane %v894, 1
      %v896 = vadd.f32 %v894, %v895
      %v897 = vld [vmem:[%s5] sm:$0xff]
      %v898 = vld [vmem:[%s5 + $0x8] sm:$0xff]
      %v899 = vld [vmem:[%s5 + $0x10] sm:$0xff]
      %v900 = vld [vmem:[%s5 + $0x18] sm:$0xff]
      %v901 = vld [vmem:[%s5 + $0x20] sm:$0xff]
      %v902 = vld [vmem:[%s5 + $0x28] sm:$0xff]
      %v903 = vld [vmem:[%s5 + $0x30] sm:$0xff]
      %v904 = vld [vmem:[%s5 + $0x38] sm:$0xff]
      %v905 = vld [vmem:[%s5 + $0x40] sm:$0xff]
      %v906 = vld [vmem:[%s5 + $0x48] sm:$0xff]
      %v907 = vld [vmem:[%s5 + $0x50] sm:$0xff]
      %v908 = vld [vmem:[%s5 + $0x58] sm:$0xff]
      %v909 = vld [vmem:[%s5 + $0x60] sm:$0xff]
      %v910 = vld [vmem:[%s5 + $0x68] sm:$0xff]
      %v911 = vld [vmem:[%s5 + $0x70] sm:$0xff]
      %v912 = vld [vmem:[%s5 + $0x78] sm:$0xff]
      %v913 = vld [vmem:[%s6] sm:$0x1]
      %914 = vmatprep.subr.mxu0 0.0
      %915 = vmatpush1.msra.mxu0 %v897
      %916 = vmatprep.subr.mxu0 0.0
      %917 = vmatpush1.msra.mxu0 %v898
      %918 = vmatprep.subr.mxu0 0.0
      %919 = vmatpush1.msra.mxu0 %v899
      %920 = vmatprep.subr.mxu0 0.0
      %921 = vmatpush1.msra.mxu0 %v900
      %922 = vmatprep.subr.mxu0 0.0
      %923 = vmatpush1.msra.mxu0 %v901
      %924 = vmatprep.subr.mxu0 0.0
      %925 = vmatpush1.msra.mxu0 %v902
      %926 = vmatprep.subr.mxu0 0.0
      %927 = vmatpush1.msra.mxu0 %v903
      %928 = vmatprep.subr.mxu0 0.0
      %929 = vmatpush1.msra.mxu0 %v904
      %930 = vmatprep.subr.mxu0 0.0
      %931 = vmatpush1.msra.mxu0 %v905
      %932 = vmatprep.subr.mxu0 0.0
      %933 = vmatpush1.msra.mxu0 %v906
      %934 = vmatprep.subr.mxu0 0.0
      %935 = vmatpush1.msra.mxu0 %v907
      %936 = vmatprep.subr.mxu0 0.0
      %937 = vmatpush1.msra.mxu0 %v908
      %938 = vmatprep.subr.mxu0 0.0
      %939 = vmatpush1.msra.mxu0 %v909
      %940 = vmatprep.subr.mxu0 0.0
      %941 = vmatpush1.msra.mxu0 %v910
      %942 = vmatprep.subr.mxu0 0.0
      %943 = vmatpush1.msra.mxu0 %v911
      %944 = vmatprep.subr.mxu0 0.0
      %945 = vmatpush1.msra.mxu0 %v912
      %946 = vmatprep.subr.mxu0 0.0
      %947 = vmatpush1.msra.mxu0 0.0
      %948 = vmatprep.subr.mxu0 0.0
      %949 = vmatpush1.msra.mxu0 0.0
      %950 = vmatprep.subr.mxu0 0.0
      %951 = vmatpush1.msra.mxu0 0.0
      %952 = vmatprep.subr.mxu0 0.0
      %953 = vmatpush1.msra.mxu0 0.0
      %954 = vmatprep.subr.mxu0 0.0
      %955 = vmatpush1.msra.mxu0 0.0
      %956 = vmatprep.subr.mxu0 0.0
      %957 = vmatpush1.msra.mxu0 0.0
      %958 = vmatprep.subr.mxu0 0.0
      %959 = vmatpush1.msra.mxu0 0.0
      %960 = vmatprep.subr.mxu0 0.0
      %961 = vmatpush1.msra.mxu0 0.0
      %962 = vmatprep.subr.mxu0 0.0
      %963 = vmatpush1.msra.mxu0 0.0
      %964 = vmatprep.subr.mxu0 0.0
      %965 = vmatpush1.msra.mxu0 0.0
      %966 = vmatprep.subr.mxu0 0.0
      %967 = vmatpush1.msra.mxu0 0.0
      %968 = vmatprep.subr.mxu0 0.0
      %969 = vmatpush1.msra.mxu0 0.0
      %970 = vmatprep.subr.mxu0 0.0
      %971 = vmatpush1.msra.mxu0 0.0
      %972 = vmatprep.subr.mxu0 0.0
      %973 = vmatpush1.msra.mxu0 0.0
      %974 = vmatprep.subr.mxu0 0.0
      %975 = vmatpush1.msra.mxu0 0.0
      %976 = vmatprep.subr.mxu0 0.0
      %977 = vmatpush1.msra.mxu0 0.0
      %978 = vmatprep.mubr.f32.mxu0 0.0
      %979 = vmatmul.mubr.f32.gmra.mrb[0].mxu0 %v896
      %v980 = vpop.f32.mrb[0].mxu0
      %v981 = vadd.f32 %v913, %v980
      %v982 = vpop.f32.mrb[0].mxu0
      %983 = vdwg.mxu0
      %v984 = vmax.f32 %v981, 0.0
      %v985 = vld [vmem:[%s7] sm:$0x3]
      %v986 = vld [vmem:[%s8] sm:$0x1]
      %vm987 = vcmask 15360
      %v989 = vsel %vm987, %v984, 0
      %vm991 = vcmask 1041408
      %v993 = vsel %vm991, %v985, 0
      %995 = vmatprep.subr.mxu0 0.0
      %996 = vmatpush1.msra.mxu0 %v993
      %997 = vmatprep.subr.mxu0 0.0
      %998 = vmatpush1.msra.mxu0 0.0
      %999 = vmatprep.subr.mxu0 0.0
      %1000 = vmatpush1.msra.mxu0 0.0
      %1001 = vmatprep.subr.mxu0 0.0
      %1002 = vmatpush1.msra.mxu0 0.0
      %1003 = vmatprep.subr.mxu0 0.0
      %1004 = vmatpush1.msra.mxu0 0.0
      %1005 = vmatprep.subr.mxu0 0.0
      %1006 = vmatpush1.msra.mxu0 0.0
      %1007 = vmatprep.subr.mxu0 0.0
      %1008 = vmatpush1.msra.mxu0 0.0
      %1009 = vmatprep.subr.mxu0 0.0
      %1010 = vmatpush1.msra.mxu0 0.0
      %1011 = vmatprep.subr.mxu0 0.0
      %1012 = vmatpush1.msra.mxu0 0.0
      %1013 = vmatprep.subr.mxu0 0.0
      %1014 = vmatpush1.msra.mxu0 0.0
      %1015 = vmatprep.subr.mxu0 0.0
      %1016 = vmatpush1.msra.mxu0 0.0
      %1017 = vmatprep.subr.mxu0 0.0
      %1018 = vmatpush1.msra.mxu0 0.0
      %1019 = vmatprep.subr.mxu0 0.0
      %1020 = vmatpush1.msra.mxu0 0.0
      %1021 = vmatprep.subr.mxu0 0.0
      %1022 = vmatpush1.msra.mxu0 0.0
      %1023 = vmatprep.subr.mxu0 0.0
      %1024 = vmatpush1.msra.mxu0 0.0
      %1025 = vmatprep.subr.mxu0 0.0
      %1026 = vmatpush1.msra.mxu0 0.0
      %1027 = vmatprep.subr.mxu0 0.0
      %1028 = vmatpush1.msra.mxu0 0.0
      %1029 = vmatprep.subr.mxu0 0.0
      %1030 = vmatpush1.msra.mxu0 0.0
      %1031 = vmatprep.subr.mxu0 0.0
      %1032 = vmatpush1.msra.mxu0 0.0
      %1033 = vmatprep.subr.mxu0 0.0
      %1034 = vmatpush1.msra.mxu0 0.0
      %1035 = vmatprep.subr.mxu0 0.0
      %1036 = vmatpush1.msra.mxu0 0.0
      %1037 = vmatprep.subr.mxu0 0.0
      %1038 = vmatpush1.msra.mxu0 0.0
      %1039 = vmatprep.subr.mxu0 0.0
      %1040 = vmatpush1.msra.mxu0 0.0
      %1041 = vmatprep.subr.mxu0 0.0
      %1042 = vmatpush1.msra.mxu0 0.0
      %1043 = vmatprep.subr.mxu0 0.0
      %1044 = vmatpush1.msra.mxu0 0.0
      %1045 = vmatprep.subr.mxu0 0.0
      %1046 = vmatpush1.msra.mxu0 0.0
      %1047 = vmatprep.subr.mxu0 0.0
      %1048 = vmatpush1.msra.mxu0 0.0
      %1049 = vmatprep.subr.mxu0 0.0
      %1050 = vmatpush1.msra.mxu0 0.0
      %1051 = vmatprep.subr.mxu0 0.0
      %1052 = vmatpush1.msra.mxu0 0.0
      %1053 = vmatprep.subr.mxu0 0.0
      %1054 = vmatpush1.msra.mxu0 0.0
      %1055 = vmatprep.subr.mxu0 0.0
      %1056 = vmatpush1.msra.mxu0 0.0
      %1057 = vmatprep.subr.mxu0 0.0
      %1058 = vmatpush1.msra.mxu0 0.0
      %1059 = vmatprep.mubr.f32.mxu0 0.0
      %1060 = vmatmul.mubr.f32.gmra.mrb[0].mxu0 %v989
      %v1061 = vpop.f32.mrb[0].mxu0
      %v1062 = vadd.f32 %v986, %v1061
      %v1063 = vpop.f32.mrb[0].mxu0
      %1064 = vdwg.mxu0
      %v1065 = vxor.u32 %v1062, 2147483648
      %v1066 = vmul.f32 %v1065, 1.442695
      %v1067 = vpow.pop %v1066
      %v1068 = vadd.f32 %v1067, 1.0
      %v1069 = vrcp.pop %v1068
      %v1070 = vmul.f32 1.0, %v1069
      %v1071 = vlaneseq
      %v1072 = vshrl.u32 %v1071, 7
      %v1073 = vsub.s32 0, %v1072
      %v1074 = vrot.slane %v1070, %v1073
      %v1075 = vmul.f32 %v888, %v1074
      %v1076 = vmul.f32 %v889, %v1074
      %v1077 = vld [vmem:[%s13] sm:$0xff]
      %vm1078 = vcmask 130048
      %v1080 = vsel %vm1078, %v1077, 0
      %1082 = vmatprep.subr.mxu0 0.0
      %1083 = vmatpush1.msra.mxu0 %v1075
      %1084 = vmatprep.subr.mxu0 0.0
      %1085 = vmatpush1.msra.mxu0 %v1076
      %1086 = vmatprep.subr.mxu0 0.0
      %1087 = vmatpush1.msra.mxu0 0.0
      %1088 = vmatprep.subr.mxu0 0.0
      %1089 = vmatpush1.msra.mxu0 0.0
      %1090 = vmatprep.subr.mxu0 0.0
      %1091 = vmatpush1.msra.mxu0 0.0
      %1092 = vmatprep.subr.mxu0 0.0
      %1093 = vmatpush1.msra.mxu0 0.0
      %1094 = vmatprep.subr.mxu0 0.0
      %1095 = vmatpush1.msra.mxu0 0.0
      %1096 = vmatprep.subr.mxu0 0.0
      %1097 = vmatpush1.msra.mxu0 0.0
      %1098 = vmatprep.subr.mxu0 0.0
      %1099 = vmatpush1.msra.mxu0 0.0
      %1100 = vmatprep.subr.mxu0 0.0
      %1101 = vmatpush1.msra.mxu0 0.0
      %1102 = vmatprep.subr.mxu0 0.0
      %1103 = vmatpush1.msra.mxu0 0.0
      %1104 = vmatprep.subr.mxu0 0.0
      %1105 = vmatpush1.msra.mxu0 0.0
      %1106 = vmatprep.subr.mxu0 0.0
      %1107 = vmatpush1.msra.mxu0 0.0
      %1108 = vmatprep.subr.mxu0 0.0
      %1109 = vmatpush1.msra.mxu0 0.0
      %1110 = vmatprep.subr.mxu0 0.0
      %1111 = vmatpush1.msra.mxu0 0.0
      %1112 = vmatprep.subr.mxu0 0.0
      %1113 = vmatpush1.msra.mxu0 0.0
      %1114 = vmatprep.subr.mxu0 0.0
      %1115 = vmatpush1.msra.mxu0 0.0
      %1116 = vmatprep.subr.mxu0 0.0
      %1117 = vmatpush1.msra.mxu0 0.0
      %1118 = vmatprep.subr.mxu0 0.0
      %1119 = vmatpush1.msra.mxu0 0.0
      %1120 = vmatprep.subr.mxu0 0.0
      %1121 = vmatpush1.msra.mxu0 0.0
      %1122 = vmatprep.subr.mxu0 0.0
      %1123 = vmatpush1.msra.mxu0 0.0
      %1124 = vmatprep.subr.mxu0 0.0
      %1125 = vmatpush1.msra.mxu0 0.0
      %1126 = vmatprep.subr.mxu0 0.0
      %1127 = vmatpush1.msra.mxu0 0.0
      %1128 = vmatprep.subr.mxu0 0.0
      %1129 = vmatpush1.msra.mxu0 0.0
      %1130 = vmatprep.subr.mxu0 0.0
      %1131 = vmatpush1.msra.mxu0 0.0
      %1132 = vmatprep.subr.mxu0 0.0
      %1133 = vmatpush1.msra.mxu0 0.0
      %1134 = vmatprep.subr.mxu0 0.0
      %1135 = vmatpush1.msra.mxu0 0.0
      %1136 = vmatprep.subr.mxu0 0.0
      %1137 = vmatpush1.msra.mxu0 0.0
      %1138 = vmatprep.subr.mxu0 0.0
      %1139 = vmatpush1.msra.mxu0 0.0
      %1140 = vmatprep.subr.mxu0 0.0
      %1141 = vmatpush1.msra.mxu0 0.0
      %1142 = vmatprep.subr.mxu0 0.0
      %1143 = vmatpush1.msra.mxu0 0.0
      %1144 = vmatprep.subr.mxu0 0.0
      %1145 = vmatpush1.msra.mxu0 0.0
      %1146 = vmatprep.mubr.f32.mxu0 0.0
      %1147 = vmatmul.mubr.f32.gmra.mrb[0].mxu0 %v1080
      %v1148 = vpop.f32.mrb[0].mxu0
      %v1149 = vadd.f32 0.0, %v1148
      %v1150 = vpop.f32.mrb[0].mxu0
      %1151 = vdwg.mxu0
      %1152 = vmatprep.subr.mxu0 0.0
      %1153 = vmatpush1.msra.mxu0 %v466
      %1154 = vmatprep.subr.mxu0 0.0
      %1155 = vmatpush1.msra.mxu0 %v467
      %1156 = vmatprep.subr.mxu0 0.0
      %1157 = vmatpush1.msra.mxu0 0.0
      %1158 = vmatprep.subr.mxu0 0.0
      %1159 = vmatpush1.msra.mxu0 0.0
      %1160 = vmatprep.subr.mxu0 0.0
      %1161 = vmatpush1.msra.mxu0 0.0
      %1162 = vmatprep.subr.mxu0 0.0
      %1163 = vmatpush1.msra.mxu0 0.0
      %1164 = vmatprep.subr.mxu0 0.0
      %1165 = vmatpush1.msra.mxu0 0.0
      %1166 = vmatprep.subr.mxu0 0.0
      %1167 = vmatpush1.msra.mxu0 0.0
      %1168 = vmatprep.subr.mxu0 0.0
      %1169 = vmatpush1.msra.mxu0 0.0
      %1170 = vmatprep.subr.mxu0 0.0
      %1171 = vmatpush1.msra.mxu0 0.0
      %1172 = vmatprep.subr.mxu0 0.0
      %1173 = vmatpush1.msra.mxu0 0.0
      %1174 = vmatprep.subr.mxu0 0.0
      %1175 = vmatpush1.msra.mxu0 0.0
      %1176 = vmatprep.subr.mxu0 0.0
      %1177 = vmatpush1.msra.mxu0 0.0
      %1178 = vmatprep.subr.mxu0 0.0
      %1179 = vmatpush1.msra.mxu0 0.0
      %1180 = vmatprep.subr.mxu0 0.0
      %1181 = vmatpush1.msra.mxu0 0.0
      %1182 = vmatprep.subr.mxu0 0.0
      %1183 = vmatpush1.msra.mxu0 0.0
      %1184 = vmatprep.subr.mxu0 0.0
      %1185 = vmatpush1.msra.mxu0 0.0
      %1186 = vmatprep.subr.mxu0 0.0
      %1187 = vmatpush1.msra.mxu0 0.0
      %1188 = vmatprep.subr.mxu0 0.0
      %1189 = vmatpush1.msra.mxu0 0.0
      %1190 = vmatprep.subr.mxu0 0.0
      %1191 = vmatpush1.msra.mxu0 0.0
      %1192 = vmatprep.subr.mxu0 0.0
      %1193 = vmatpush1.msra.mxu0 0.0
      %1194 = vmatprep.subr.mxu0 0.0
      %1195 = vmatpush1.msra.mxu0 0.0
      %1196 = vmatprep.subr.mxu0 0.0
      %1197 = vmatpush1.msra.mxu0 0.0
      %1198 = vmatprep.subr.mxu0 0.0
      %1199 = vmatpush1.msra.mxu0 0.0
      %1200 = vmatprep.subr.mxu0 0.0
      %1201 = vmatpush1.msra.mxu0 0.0
      %1202 = vmatprep.subr.mxu0 0.0
      %1203 = vmatpush1.msra.mxu0 0.0
      %1204 = vmatprep.subr.mxu0 0.0
      %1205 = vmatpush1.msra.mxu0 0.0
      %1206 = vmatprep.subr.mxu0 0.0
      %1207 = vmatpush1.msra.mxu0 0.0
      %1208 = vmatprep.subr.mxu0 0.0
      %1209 = vmatpush1.msra.mxu0 0.0
      %1210 = vmatprep.subr.mxu0 0.0
      %1211 = vmatpush1.msra.mxu0 0.0
      %1212 = vmatprep.subr.mxu0 0.0
      %1213 = vmatpush1.msra.mxu0 0.0
      %1214 = vmatprep.subr.mxu0 0.0
      %1215 = vmatpush1.msra.mxu0 0.0
      %1216 = vmatprep.mubr.f32.mxu0 0.0
      %1217 = vmatmul.mubr.f32.gmra.mrb[0].mxu0 %v1080
      %v1218 = vpop.f32.mrb[0].mxu0
      %v1219 = vadd.f32 0.0, %v1218
      %v1220 = vpop.f32.mrb[0].mxu0
      %1221 = vdwg.mxu0
      %v1222 = vld [vmem:[%s9] sm:$0xff]
      %v1223 = vld [vmem:[%s9 + $0x8] sm:$0xff]
      %v1224 = vld [vmem:[%s9 + $0x10] sm:$0xff]
      %v1225 = vld [vmem:[%s9 + $0x18] sm:$0xff]
      %v1226 = vld [vmem:[%s9 + $0x20] sm:$0xff]
      %v1227 = vld [vmem:[%s9 + $0x28] sm:$0xff]
      %v1228 = vld [vmem:[%s9 + $0x30] sm:$0xff]
      %v1229 = vld [vmem:[%s9 + $0x38] sm:$0xff]
      %v1230 = vld [vmem:[%s9 + $0x40] sm:$0xff]
      %v1231 = vld [vmem:[%s9 + $0x48] sm:$0xff]
      %v1232 = vld [vmem:[%s9 + $0x50] sm:$0xff]
      %v1233 = vld [vmem:[%s9 + $0x58] sm:$0xff]
      %v1234 = vld [vmem:[%s9 + $0x60] sm:$0xff]
      %v1235 = vld [vmem:[%s9 + $0x68] sm:$0xff]
      %v1236 = vld [vmem:[%s9 + $0x70] sm:$0xff]
      %v1237 = vld [vmem:[%s9 + $0x78] sm:$0xff]
      %v1238 = vld [vmem:[%s10] sm:$0x1]
      %v1240 = vlaneseq
      %v1241 = vshrl.u32 %v1240, 7
      %v1242 = vsub.s32 0, %v1241
      %v1243 = vrot.slane %v1238, %v1242
      %1245 = vmatprep.subr.mxu0 0.0
      %1246 = vmatpush1.msra.mxu0 %v1222
      %1247 = vmatprep.subr.mxu0 0.0
      %1248 = vmatpush1.msra.mxu0 %v1223
      %1249 = vmatprep.subr.mxu0 0.0
      %1250 = vmatpush1.msra.mxu0 %v1224
      %1251 = vmatprep.subr.mxu0 0.0
      %1252 = vmatpush1.msra.mxu0 %v1225
      %1253 = vmatprep.subr.mxu0 0.0
      %1254 = vmatpush1.msra.mxu0 %v1226
      %1255 = vmatprep.subr.mxu0 0.0
      %1256 = vmatpush1.msra.mxu0 %v1227
      %1257 = vmatprep.subr.mxu0 0.0
      %1258 = vmatpush1.msra.mxu0 %v1228
      %1259 = vmatprep.subr.mxu0 0.0
      %1260 = vmatpush1.msra.mxu0 %v1229
      %1261 = vmatprep.subr.mxu0 0.0
      %1262 = vmatpush1.msra.mxu0 %v1230
      %1263 = vmatprep.subr.mxu0 0.0
      %1264 = vmatpush1.msra.mxu0 %v1231
      %1265 = vmatprep.subr.mxu0 0.0
      %1266 = vmatpush1.msra.mxu0 %v1232
      %1267 = vmatprep.subr.mxu0 0.0
      %1268 = vmatpush1.msra.mxu0 %v1233
      %1269 = vmatprep.subr.mxu0 0.0
      %1270 = vmatpush1.msra.mxu0 %v1234
      %1271 = vmatprep.subr.mxu0 0.0
      %1272 = vmatpush1.msra.mxu0 %v1235
      %1273 = vmatprep.subr.mxu0 0.0
      %1274 = vmatpush1.msra.mxu0 %v1236
      %1275 = vmatprep.subr.mxu0 0.0
      %1276 = vmatpush1.msra.mxu0 %v1237
      %1277 = vmatprep.subr.mxu0 0.0
      %1278 = vmatpush1.msra.mxu0 0.0
      %1279 = vmatprep.subr.mxu0 0.0
      %1280 = vmatpush1.msra.mxu0 0.0
      %1281 = vmatprep.subr.mxu0 0.0
      %1282 = vmatpush1.msra.mxu0 0.0
      %1283 = vmatprep.subr.mxu0 0.0
      %1284 = vmatpush1.msra.mxu0 0.0
      %1285 = vmatprep.subr.mxu0 0.0
      %1286 = vmatpush1.msra.mxu0 0.0
      %1287 = vmatprep.subr.mxu0 0.0
      %1288 = vmatpush1.msra.mxu0 0.0
      %1289 = vmatprep.subr.mxu0 0.0
      %1290 = vmatpush1.msra.mxu0 0.0
      %1291 = vmatprep.subr.mxu0 0.0
      %1292 = vmatpush1.msra.mxu0 0.0
      %1293 = vmatprep.subr.mxu0 0.0
      %1294 = vmatpush1.msra.mxu0 0.0
      %1295 = vmatprep.subr.mxu0 0.0
      %1296 = vmatpush1.msra.mxu0 0.0
      %1297 = vmatprep.subr.mxu0 0.0
      %1298 = vmatpush1.msra.mxu0 0.0
      %1299 = vmatprep.subr.mxu0 0.0
      %1300 = vmatpush1.msra.mxu0 0.0
      %1301 = vmatprep.subr.mxu0 0.0
      %1302 = vmatpush1.msra.mxu0 0.0
      %1303 = vmatprep.subr.mxu0 0.0
      %1304 = vmatpush1.msra.mxu0 0.0
      %1305 = vmatprep.subr.mxu0 0.0
      %1306 = vmatpush1.msra.mxu0 0.0
      %1307 = vmatprep.subr.mxu0 0.0
      %1308 = vmatpush1.msra.mxu0 0.0
      %1309 = vmatprep.mubr.f32.mxu0 0.0
      %1310 = vmatmul.mubr.f32.gmra.mrb[0].mxu0 %v1149
      %v1311 = vpop.f32.mrb[0].mxu0
      %v1312 = vadd.f32 %v1243, %v1311
      %v1313 = vpop.f32.mrb[0].mxu0
      %1314 = vdwg.mxu0
      %v1315 = vld [vmem:[%s11] sm:$0xff]
      %v1316 = vld [vmem:[%s11 + $0x8] sm:$0xff]
      %v1317 = vld [vmem:[%s11 + $0x10] sm:$0xff]
      %v1318 = vld [vmem:[%s11 + $0x18] sm:$0xff]
      %v1319 = vld [vmem:[%s11 + $0x20] sm:$0xff]
      %v1320 = vld [vmem:[%s11 + $0x28] sm:$0xff]
      %v1321 = vld [vmem:[%s11 + $0x30] sm:$0xff]
      %v1322 = vld [vmem:[%s11 + $0x38] sm:$0xff]
      %v1323 = vld [vmem:[%s11 + $0x40] sm:$0xff]
      %v1324 = vld [vmem:[%s11 + $0x48] sm:$0xff]
      %v1325 = vld [vmem:[%s11 + $0x50] sm:$0xff]
      %v1326 = vld [vmem:[%s11 + $0x58] sm:$0xff]
      %v1327 = vld [vmem:[%s11 + $0x60] sm:$0xff]
      %v1328 = vld [vmem:[%s11 + $0x68] sm:$0xff]
      %v1329 = vld [vmem:[%s11 + $0x70] sm:$0xff]
      %v1330 = vld [vmem:[%s11 + $0x78] sm:$0xff]
      %v1331 = vld [vmem:[%s12] sm:$0x1]
      %v1333 = vlaneseq
      %v1334 = vshrl.u32 %v1333, 7
      %v1335 = vsub.s32 0, %v1334
      %v1336 = vrot.slane %v1331, %v1335
      %1338 = vmatprep.subr.mxu0 0.0
      %1339 = vmatpush1.msra.mxu0 %v1315
      %1340 = vmatprep.subr.mxu0 0.0
      %1341 = vmatpush1.msra.mxu0 %v1316
      %1342 = vmatprep.subr.mxu0 0.0
      %1343 = vmatpush1.msra.mxu0 %v1317
      %1344 = vmatprep.subr.mxu0 0.0
      %1345 = vmatpush1.msra.mxu0 %v1318
      %1346 = vmatprep.subr.mxu0 0.0
      %1347 = vmatpush1.msra.mxu0 %v1319
      %1348 = vmatprep.subr.mxu0 0.0
      %1349 = vmatpush1.msra.mxu0 %v1320
      %1350 = vmatprep.subr.mxu0 0.0
      %1351 = vmatpush1.msra.mxu0 %v1321
      %1352 = vmatprep.subr.mxu0 0.0
      %1353 = vmatpush1.msra.mxu0 %v1322
      %1354 = vmatprep.subr.mxu0 0.0
      %1355 = vmatpush1.msra.mxu0 %v1323
      %1356 = vmatprep.subr.mxu0 0.0
      %1357 = vmatpush1.msra.mxu0 %v1324
      %1358 = vmatprep.subr.mxu0 0.0
      %1359 = vmatpush1.msra.mxu0 %v1325
      %1360 = vmatprep.subr.mxu0 0.0
      %1361 = vmatpush1.msra.mxu0 %v1326
      %1362 = vmatprep.subr.mxu0 0.0
      %1363 = vmatpush1.msra.mxu0 %v1327
      %1364 = vmatprep.subr.mxu0 0.0
      %1365 = vmatpush1.msra.mxu0 %v1328
      %1366 = vmatprep.subr.mxu0 0.0
      %1367 = vmatpush1.msra.mxu0 %v1329
      %1368 = vmatprep.subr.mxu0 0.0
      %1369 = vmatpush1.msra.mxu0 %v1330
      %1370 = vmatprep.subr.mxu0 0.0
      %1371 = vmatpush1.msra.mxu0 0.0
      %1372 = vmatprep.subr.mxu0 0.0
      %1373 = vmatpush1.msra.mxu0 0.0
      %1374 = vmatprep.subr.mxu0 0.0
      %1375 = vmatpush1.msra.mxu0 0.0
      %1376 = vmatprep.subr.mxu0 0.0
      %1377 = vmatpush1.msra.mxu0 0.0
      %1378 = vmatprep.subr.mxu0 0.0
      %1379 = vmatpush1.msra.mxu0 0.0
      %1380 = vmatprep.subr.mxu0 0.0
      %1381 = vmatpush1.msra.mxu0 0.0
      %1382 = vmatprep.subr.mxu0 0.0
      %1383 = vmatpush1.msra.mxu0 0.0
      %1384 = vmatprep.subr.mxu0 0.0
      %1385 = vmatpush1.msra.mxu0 0.0
      %1386 = vmatprep.subr.mxu0 0.0
      %1387 = vmatpush1.msra.mxu0 0.0
      %1388 = vmatprep.subr.mxu0 0.0
      %1389 = vmatpush1.msra.mxu0 0.0
      %1390 = vmatprep.subr.mxu0 0.0
      %1391 = vmatpush1.msra.mxu0 0.0
      %1392 = vmatprep.subr.mxu0 0.0
      %1393 = vmatpush1.msra.mxu0 0.0
      %1394 = vmatprep.subr.mxu0 0.0
      %1395 = vmatpush1.msra.mxu0 0.0
      %1396 = vmatprep.subr.mxu0 0.0
      %1397 = vmatpush1.msra.mxu0 0.0
      %1398 = vmatprep.subr.mxu0 0.0
      %1399 = vmatpush1.msra.mxu0 0.0
      %1400 = vmatprep.subr.mxu0 0.0
      %1401 = vmatpush1.msra.mxu0 0.0
      %1402 = vmatprep.mubr.f32.mxu0 0.0
      %1403 = vmatmul.mubr.f32.gmra.mrb[0].mxu0 %v1219
      %v1404 = vpop.f32.mrb[0].mxu0
      %v1405 = vadd.f32 %v1336, %v1404
      %v1406 = vpop.f32.mrb[0].mxu0
      %1407 = vdwg.mxu0
      %v1408 = vadd.f32 %v1405, %v1312
      %1409 = vst [vmem:[%s465] sm:$0xff] %v1408
      %p1410 = scmp.lt.s32.totalorder %s25, 1
      %s1411 = scalar_select %p1410, %s25, 1
      %s1412 = smul.addr %s1411, 8
      %s1413 = scalar_lea.vmem %s14, %s1412
      // Predicated region
      $region77: #{mbconv1_pallas.1} parent=75 // pred_check
        %p1414 = pneg %p342
      $region78: #{mbconv1_pallas.1} parent=75 // pred_check_branch
        %1416 = sbr.rel (%p1414) target = $region80
      $region79: #{mbconv1_pallas.1} parent=75 // pred_region
        _
      $region80: #{mbconv1_pallas.1} parent=75 // pred_fallthru
        _
    $region76: #{mbconv1_pallas.1} parent=5 // pred_fallthru
      _
    %p1417 = scmp.le.s32.totalorder 2, %s20
    // Predicated region
    $region81: #{mbconv1_pallas.1} parent=5 // pred_check
      %p1418 = pneg %p1417
    $region82: #{mbconv1_pallas.1} parent=5 // pred_check_branch
      %1420 = sbr.rel (%p1418) target = $region84
    $region83: #{mbconv1_pallas.1} parent=5 // pred_region
      %s1421 = ssub.s32 %s20, 2
      // Predicated region
      $region85: #{mbconv1_pallas.1} parent=83 // pred_check
        %p1422 = pneg %p348
      $region86: #{mbconv1_pallas.1} parent=83 // pred_check_branch
        %1424 = sbr.rel (%p1422) target = $region88
      $region87: #{mbconv1_pallas.1} parent=83 // pred_region
        %p1425 = scmp.lt.s32.totalorder %s26, 1
        %s1426 = scalar_select %p1425, %s26, 1
        %s1427 = smul.addr %s1426, 8
        %s1428 = scalar_lea.vmem %s14, %s1427
      $region88: #{mbconv1_pallas.1} parent=83 // pred_fallthru
        _
    $region84: #{mbconv1_pallas.1} parent=5 // pred_fallthru
      _
  $region6: #{mbconv1_pallas.1} parent=0 // loop_footer
    %s24 = sadd.s32 1, %s20
  $region7: #{mbconv1_pallas.1} parent=0 // loop_footer_branch
    %19 = sbr.rel target = $region3
  $region8: #{mbconv1_pallas.1} parent=0 // loop_exit
    _

</llo_original>
